<compile_context>
chip_gen: v7x
topology: tpu7x:2x2x1
jax: 0.10.0
libtpu: 0.0.40
codegen_flags: <defaults>
</compile_context>

<pallas_src>
import jax
import jax.numpy as jnp
from jax.experimental import pallas as pl
from jax.experimental.pallas import tpu as pltpu


def _round_up(x, m):
    return ((x + m - 1) // m) * m


def _make_conv_lrelu_kernel(KH, KW, stride, toh, OW_k, Cin, tile_co, negative_slope):
    """Fused conv + LeakyReLU kernel for one (image, row-tile, Cout-tile) grid step."""
    K = KH * KW * Cin

    def kernel(xs_ref, w_ref, o_ref, patch_ref):
        # xs_ref   : (S2, toh+HH, C_req, Cin) bf16  parity-split row tile (+halo):
        #            xs_ref[r*stride + c, i, j, :] == x_pad[stride*(row0 + i) + r,
        #                                                   stride*j + c, :]
        # w_ref    : (K, tile_co)             bf16  (K index = kh*KW*Cin + kw*Cin + ci)
        # o_ref    : (1, toh, OW_k, tile_co)  out dtype
        # patch_ref: (toh*OW_k, K)            bf16  im2col staging (VMEM scratch)
        #
        # Stage the KH*KW taps into the fused-K LHS (static slices, static lane offsets).
        for kh in range(KH):
            for kw in range(KW):
                p = (kh % stride) * stride + (kw % stride)   # parity plane
                dh = kh // stride
                dw = kw // stride
                tap = xs_ref[p, dh:dh + toh, dw:dw + OW_k, :]          # (toh, OW_k, Cin)
                c0 = (kh * KW + kw) * Cin
                patch_ref[:, c0:c0 + Cin] = tap.reshape(toh * OW_k, Cin)
        # One MXU matmul with full contraction depth K = KH*KW*Cin, f32 accumulation.
        acc = jnp.dot(patch_ref[...], w_ref[...], preferred_element_type=jnp.float32)
        acc = jnp.where(acc >= 0.0, acc, negative_slope * acc)        # fused LeakyReLU
        o_ref[...] = acc.reshape(1, toh, OW_k, tile_co).astype(o_ref.dtype)

    return kernel


def spectral_norm_weight(w, key, n_power_iterations=1, eps=1e-12):
    """Mirror torch.nn.utils.spectral_norm (dim=0, 1 power iteration per forward).
    NOTE: torch persists `u` as a buffer across forwards; here we use a deterministic
    random init per call (fine for single inference, not bit-exact training parity)."""
    o = w.shape[0]
    w_mat = w.reshape(o, -1)
    u = jax.random.normal(key, (o,), dtype=w.dtype)
    u = u / jnp.maximum(jnp.linalg.norm(u), eps)
    v = None
    for _ in range(n_power_iterations):
        v = w_mat.T @ u
        v = v / jnp.maximum(jnp.linalg.norm(v), eps)
        u = w_mat @ v
        u = u / jnp.maximum(jnp.linalg.norm(u), eps)
    sigma = u @ (w_mat @ v)
    return w / sigma


def cnn_block_forward(x_nchw, weight, *, stride=2, negative_slope=0.2,
                      out_dtype=None, rows_per_tile=None, tile_co_max=256):
    """CNNBlock forward: reflect-pad conv(k=4, stride, pad=1, no bias) + LeakyReLU."""
    N, Cin, H, W = x_nchw.shape
    Cout, Cin_w, KH, KW = weight.shape
    assert Cin == Cin_w
    pad = 1
    out_dtype = x_nchw.dtype if out_dtype is None else out_dtype
    out_itemsize = jnp.dtype(out_dtype).itemsize

    Hp, Wp = H + 2 * pad, W + 2 * pad
    OH = (Hp - KH) // stride + 1
    OW = (Wp - KW) // stride + 1
    K = KH * KW * Cin
    S2 = stride * stride
    HH = (KH - 1) // stride          # row halo (in parity rows) below each row tile
    WH = (KW - 1) // stride          # col halo (in parity cols)

    # ---- Cout tiling: keep small Cout unpadded (no HBM write amplification);
    #      tile large Cout at 128/256 so weight + output tiles stay bounded.
    if Cout < 128:
        Cout_pad = Cout
        tile_co = Cout
    else:
        Cout_pad = _round_up(Cout, 128)
        tile_co = 256 if (Cout_pad % 256 == 0 and tile_co_max >= 256) else 128
    n_co = Cout_pad // tile_co

    # ---- Output-column alignment (makes every in-kernel reshape a layout no-op).
    OW_k = _round_up(OW, 16)
    C_req = OW_k + WH

    # ---- Per-generation VMEM budget (v5e/v6e: ~128 MiB, v7x: 64 MiB per core).
    try:
        vmem_cap = int(pltpu.get_tpu_info().vmem_capacity_bytes)
    except Exception:                                   # conservative fallback (v7x)
        vmem_cap = 64 * 1024 * 1024
    budget = int(0.8 * vmem_cap)

    def _vmem_step_bytes(toh_):
        # Lane/sublane-padded footprints: the Cin-last layout pads Cin to 128 lanes,
        # so the true VMEM/DMA cost is counted here (review item).
        xs_b = S2 * (toh_ + HH) * _round_up(C_req, 16) * _round_up(Cin, 128) * 2
        w_b = _round_up(K, 16) * _round_up(tile_co, 128) * 2
        o_b = toh_ * _round_up(OW_k, 16) * _round_up(tile_co, 128) * out_itemsize
        patch_b = _round_up(toh_ * OW_k, 16) * _round_up(K, 128) * 2
        return 2 * (xs_b + w_b + o_b) + patch_b         # double-buffered blocks + scratch

    if rows_per_tile is None:
        rows_per_tile = max(1, 1024 // OW_k)            # target matmul M = toh*OW ~ 1024
    toh = max(1, min(OH, int(rows_per_tile)))
    while toh > 1 and _vmem_step_bytes(toh) > budget:
        toh = max(1, toh // 2)

    n_t = pl.cdiv(OH, toh)
    OH_pad = n_t * toh
    R_req = OH_pad + HH

    # Alignment zero-padding only ever feeds output rows >= OH / cols >= OW, which
    # are sliced off below; valid outputs never read the padded tail.
    assert OH_pad >= OH and OW_k >= OW
    assert stride * (OH - 1) + KH <= stride * R_req
    assert stride * (OW - 1) + KW <= stride * C_req

    # ---- Cheap O(input) wrapper-side layout work (fused by XLA) --------------------
    x = jnp.transpose(x_nchw, (0, 2, 3, 1))                           # NCHW -> NHWC
    xp = jnp.pad(x, ((0, 0), (pad, pad), (pad, pad), (0, 0)), mode="reflect")

    Hp_need, Wp_need = stride * R_req, stride * C_req
    xp = xp[:, :min(Hp, Hp_need), :min(Wp, Wp_need), :]
    xp = jnp.pad(xp, ((0, 0), (0, Hp_need - xp.shape[1]),
                      (0, Wp_need - xp.shape[2]), (0, 0)))

    # Stride-parity split ("space-to-depth") so every kernel tap is a static slice.
    xs = xp.reshape(N, R_req, stride, C_req, stride, Cin)
    xs = jnp.transpose(xs, (0, 2, 4, 1, 3, 5))                        # (N, r, c, R, C, Cin)
    xs = xs.reshape(N, S2, R_req, C_req, Cin).astype(jnp.bfloat16)

    # Bake the row halo into per-row-tile slabs: each grid step DMAs only its own
    # (S2, toh+HH, C_req, Cin) slab -> no whole-image VMEM residency (v7x-safe),
    # same single-fetch-per-row DMA volume (halo row duplicated once per tile).
    slabs = [xs[:, :, t * toh: t * toh + toh + HH] for t in range(n_t)]
    xs_t = jnp.stack(slabs, axis=1)                    # (N, n_t, S2, toh+HH, C_req, Cin)
    xs_t = xs_t.reshape(N * n_t * S2, toh + HH, C_req, Cin)

    # Weights: (Cout, Cin, KH, KW) -> (KH*KW*Cin, Cout_pad), bf16, K order = (kh, kw, ci).
    w2 = jnp.transpose(weight, (2, 3, 1, 0)).reshape(K, Cout)
    w2 = jnp.pad(w2, ((0, 0), (0, Cout_pad - Cout))).astype(jnp.bfloat16)

    kernel = _make_conv_lrelu_kernel(KH, KW, stride, toh, OW_k, Cin, tile_co,
                                     negative_slope)

    vmem_limit = int(min(budget, max(32 * 1024 * 1024,
                                     _vmem_step_bytes(toh) + (8 << 20))))
    flops = 2 * N * OH_pad * OW_k * K * Cout_pad
    bytes_accessed = (xs_t.size * 2 + w2.size * 2
                      + N * OH_pad * OW_k * Cout_pad * out_itemsize)

    # TODO(synk): single-buffer the grid-invariant weight block
    # (pipeline_mode=pl.Buffered(1)) once verified on the deployed jax version;
    # pure VMEM saving on v7x with zero perf cost.
    out = pl.pallas_call(
        kernel,
        out_shape=jax.ShapeDtypeStruct((N, OH_pad, OW_k, Cout_pad), out_dtype),
        grid_spec=pltpu.PrefetchScalarGridSpec(
            num_scalar_prefetch=0,
            grid=(N, n_t, n_co),
            in_specs=[
                # Row-tile (+halo) slab of the parity-split image; invariant in co
                # (co is the fastest grid axis, so the slab is not re-DMA'd per co).
                pl.BlockSpec((S2, toh + HH, C_req, Cin),
                             lambda n, t, co: (n * n_t + t, 0, 0, 0)),
                # Cout tile of the fused-K weights; invariant in (n, t).
                pl.BlockSpec((K, tile_co), lambda n, t, co: (0, co)),
            ],
            out_specs=pl.BlockSpec((1, toh, OW_k, tile_co),
                                   lambda n, t, co: (n, t, 0, co)),
            scratch_shapes=[pltpu.VMEM((toh * OW_k, K), jnp.bfloat16)],
        ),
        compiler_params=pltpu.CompilerParams(
            dimension_semantics=("parallel", "parallel", "parallel"),
            vmem_limit_bytes=vmem_limit),
        cost_estimate=pl.CostEstimate(flops=int(flops), transcendentals=0,
                                      bytes_accessed=int(bytes_accessed)),
    )(xs_t, w2)

    # Drop alignment padding, return NCHW to match the PyTorch module interface.
    out = out[:, :OH, :OW, :Cout]
    return jnp.transpose(out, (0, 3, 1, 2))


def _reference_forward(x_nchw, weight, stride=2, negative_slope=0.2):
    """Plain-JAX reference (reflect pad + VALID conv + LeakyReLU) for sanity checking."""
    xp = jnp.pad(x_nchw, ((0, 0), (0, 0), (1, 1), (1, 1)), mode="reflect")
    y = jax.lax.conv_general_dilated(
        xp, weight, window_strides=(stride, stride), padding="VALID",
        dimension_numbers=("NCHW", "OIHW", "NCHW"))
    return jnp.where(y >= 0, y, negative_slope * y)


if __name__ == "__main__":
    base_key = jax.random.PRNGKey(0)

    # Main small config first, then configs exercising multi row-tile / multi
    # Cout-tile / stride=1 / bf16 output paths.
    configs = [
        dict(N=2, Cin=4, Cout=8, H=16, W=16, stride=2, kw={}),
        dict(N=1, Cin=8, Cout=256, H=16, W=16, stride=2,
             kw=dict(rows_per_tile=3, tile_co_max=128)),
        dict(N=1, Cin=4, Cout=8, H=10, W=10, stride=1,
             kw=dict(out_dtype=jnp.bfloat16)),
    ]

    for idx, cfg in enumerate(configs):
        k_x, k_w, k_u = jax.random.split(jax.random.fold_in(base_key, idx), 3)
        x = jax.random.normal(k_x, (cfg["N"], cfg["Cin"], cfg["H"], cfg["W"]),
                              dtype=jnp.float32)
        weight = 0.05 * jax.random.normal(
            k_w, (cfg["Cout"], cfg["Cin"], 4, 4), dtype=jnp.float32)
        weight_sn = spectral_norm_weight(weight, k_u, n_power_iterations=1)

        y = jax.block_until_ready(
            cnn_block_forward(x, weight_sn, stride=cfg["stride"], **cfg["kw"]))
        y_ref = jax.block_until_ready(
            _reference_forward(x, weight_sn, stride=cfg["stride"]))
        assert y.shape == y_ref.shape, (idx, y.shape, y_ref.shape)
        y32 = y.astype(jnp.float32)
        max_err = float(jnp.max(jnp.abs(y32 - y_ref)))
        assert max_err < 5e-2, f"config {idx}: max abs error {max_err}"
        assert bool(jnp.all(jnp.isfinite(y32)))

    print("KERNEL_OK")
</pallas_src>

<mosaic_0001>
module attributes {stable_mosaic.version = 11 : i64} {
  func.func @kernel(%arg0: i32, %arg1: i32, %arg2: i32, %arg3: memref<4x9x17x4xbf16, #tpu.memory_space<vmem>>, %arg4: memref<64x8xbf16, #tpu.memory_space<vmem>>, %arg5: memref<1x8x16x8xf32, #tpu.memory_space<vmem>>, %arg6: memref<128x64xbf16, #tpu.memory_space<vmem>>) attributes {dimension_semantics = [#tpu.dimension_semantics<parallel>, #tpu.dimension_semantics<parallel>, #tpu.dimension_semantics<parallel>], iteration_bounds = array<i64: 2, 1, 1>, scalar_prefetch = 0 : i64, scratch_operands = 1 : i64, tpu.core_type = #tpu.core_type<tc>, window_params = [{transform_indices = @transform_0, window_bounds = array<i64: 4, 9, 17, 4>}, {transform_indices = @transform_1, window_bounds = array<i64: 64, 8>}, {transform_indices = @transform_2, window_bounds = array<i64: 1, 8, 16, 8>}]} {
    %c0 = arith.constant 0 : index
    %c0_0 = arith.constant 0 : index
    %c0_1 = arith.constant 0 : index
    %c0_2 = arith.constant 0 : index
    %0 = vector.load %arg3[%c0, %c0_0, %c0_1, %c0_2] : memref<4x9x17x4xbf16, #tpu.memory_space<vmem>>, vector<1x8x16x4xbf16>
    %1 = vector.shape_cast %0 : vector<1x8x16x4xbf16> to vector<8x16x4xbf16>
    %2 = vector.shape_cast %1 : vector<8x16x4xbf16> to vector<128x4xbf16>
    %c0_3 = arith.constant 0 : index
    %c0_4 = arith.constant 0 : index
    %3 = vector.load %arg6[%c0_3, %c0_4] : memref<128x64xbf16, #tpu.memory_space<vmem>>, vector<128x4xbf16>
    tpu.vector_store %arg6[%c0_3, %c0_4], %2 {strides = array<i32>} : memref<128x64xbf16, #tpu.memory_space<vmem>>, vector<128x4xbf16>,
    %c1 = arith.constant 1 : index
    %c0_5 = arith.constant 0 : index
    %c0_6 = arith.constant 0 : index
    %c0_7 = arith.constant 0 : index
    %4 = vector.load %arg3[%c1, %c0_5, %c0_6, %c0_7] : memref<4x9x17x4xbf16, #tpu.memory_space<vmem>>, vector<1x8x16x4xbf16>
    %5 = vector.shape_cast %4 : vector<1x8x16x4xbf16> to vector<8x16x4xbf16>
    %6 = vector.shape_cast %5 : vector<8x16x4xbf16> to vector<128x4xbf16>
    %c0_8 = arith.constant 0 : index
    %c4 = arith.constant 4 : index
    %7 = vector.load %arg6[%c0_8, %c4] : memref<128x64xbf16, #tpu.memory_space<vmem>>, vector<128x4xbf16>
    tpu.vector_store %arg6[%c0_8, %c4], %6 {strides = array<i32>} : memref<128x64xbf16, #tpu.memory_space<vmem>>, vector<128x4xbf16>,
    %c0_9 = arith.constant 0 : index
    %c0_10 = arith.constant 0 : index
    %c1_11 = arith.constant 1 : index
    %c0_12 = arith.constant 0 : index
    %8 = vector.load %arg3[%c0_9, %c0_10, %c1_11, %c0_12] : memref<4x9x17x4xbf16, #tpu.memory_space<vmem>>, vector<1x8x16x4xbf16>
    %9 = vector.shape_cast %8 : vector<1x8x16x4xbf16> to vector<8x16x4xbf16>
    %10 = vector.shape_cast %9 : vector<8x16x4xbf16> to vector<128x4xbf16>
    %c0_13 = arith.constant 0 : index
    %c8 = arith.constant 8 : index
    %11 = vector.load %arg6[%c0_13, %c8] : memref<128x64xbf16, #tpu.memory_space<vmem>>, vector<128x4xbf16>
    tpu.vector_store %arg6[%c0_13, %c8], %10 {strides = array<i32>} : memref<128x64xbf16, #tpu.memory_space<vmem>>, vector<128x4xbf16>,
    %c1_14 = arith.constant 1 : index
    %c0_15 = arith.constant 0 : index
    %c1_16 = arith.constant 1 : index
    %c0_17 = arith.constant 0 : index
    %12 = vector.load %arg3[%c1_14, %c0_15, %c1_16, %c0_17] : memref<4x9x17x4xbf16, #tpu.memory_space<vmem>>, vector<1x8x16x4xbf16>
    %13 = vector.shape_cast %12 : vector<1x8x16x4xbf16> to vector<8x16x4xbf16>
    %14 = vector.shape_cast %13 : vector<8x16x4xbf16> to vector<128x4xbf16>
    %c0_18 = arith.constant 0 : index
    %c12 = arith.constant 12 : index
    %15 = vector.load %arg6[%c0_18, %c12] : memref<128x64xbf16, #tpu.memory_space<vmem>>, vector<128x4xbf16>
    tpu.vector_store %arg6[%c0_18, %c12], %14 {strides = array<i32>} : memref<128x64xbf16, #tpu.memory_space<vmem>>, vector<128x4xbf16>,
    %c2 = arith.constant 2 : index
    %c0_19 = arith.constant 0 : index
    %c0_20 = arith.constant 0 : index
    %c0_21 = arith.constant 0 : index
    %16 = vector.load %arg3[%c2, %c0_19, %c0_20, %c0_21] : memref<4x9x17x4xbf16, #tpu.memory_space<vmem>>, vector<1x8x16x4xbf16>
    %17 = vector.shape_cast %16 : vector<1x8x16x4xbf16> to vector<8x16x4xbf16>
    %18 = vector.shape_cast %17 : vector<8x16x4xbf16> to vector<128x4xbf16>
    %c0_22 = arith.constant 0 : index
    %c16 = arith.constant 16 : index
    %19 = vector.load %arg6[%c0_22, %c16] : memref<128x64xbf16, #tpu.memory_space<vmem>>, vector<128x4xbf16>
    tpu.vector_store %arg6[%c0_22, %c16], %18 {strides = array<i32>} : memref<128x64xbf16, #tpu.memory_space<vmem>>, vector<128x4xbf16>,
    %c3 = arith.constant 3 : index
    %c0_23 = arith.constant 0 : index
    %c0_24 = arith.constant 0 : index
    %c0_25 = arith.constant 0 : index
    %20 = vector.load %arg3[%c3, %c0_23, %c0_24, %c0_25] : memref<4x9x17x4xbf16, #tpu.memory_space<vmem>>, vector<1x8x16x4xbf16>
    %21 = vector.shape_cast %20 : vector<1x8x16x4xbf16> to vector<8x16x4xbf16>
    %22 = vector.shape_cast %21 : vector<8x16x4xbf16> to vector<128x4xbf16>
    %c0_26 = arith.constant 0 : index
    %c20 = arith.constant 20 : index
    %23 = vector.load %arg6[%c0_26, %c20] : memref<128x64xbf16, #tpu.memory_space<vmem>>, vector<128x4xbf16>
    tpu.vector_store %arg6[%c0_26, %c20], %22 {strides = array<i32>} : memref<128x64xbf16, #tpu.memory_space<vmem>>, vector<128x4xbf16>,
    %c2_27 = arith.constant 2 : index
    %c0_28 = arith.constant 0 : index
    %c1_29 = arith.constant 1 : index
    %c0_30 = arith.constant 0 : index
    %24 = vector.load %arg3[%c2_27, %c0_28, %c1_29, %c0_30] : memref<4x9x17x4xbf16, #tpu.memory_space<vmem>>, vector<1x8x16x4xbf16>
    %25 = vector.shape_cast %24 : vector<1x8x16x4xbf16> to vector<8x16x4xbf16>
    %26 = vector.shape_cast %25 : vector<8x16x4xbf16> to vector<128x4xbf16>
    %c0_31 = arith.constant 0 : index
    %c24 = arith.constant 24 : index
    %27 = vector.load %arg6[%c0_31, %c24] : memref<128x64xbf16, #tpu.memory_space<vmem>>, vector<128x4xbf16>
    tpu.vector_store %arg6[%c0_31, %c24], %26 {strides = array<i32>} : memref<128x64xbf16, #tpu.memory_space<vmem>>, vector<128x4xbf16>,
    %c3_32 = arith.constant 3 : index
    %c0_33 = arith.constant 0 : index
    %c1_34 = arith.constant 1 : index
    %c0_35 = arith.constant 0 : index
    %28 = vector.load %arg3[%c3_32, %c0_33, %c1_34, %c0_35] : memref<4x9x17x4xbf16, #tpu.memory_space<vmem>>, vector<1x8x16x4xbf16>
    %29 = vector.shape_cast %28 : vector<1x8x16x4xbf16> to vector<8x16x4xbf16>
    %30 = vector.shape_cast %29 : vector<8x16x4xbf16> to vector<128x4xbf16>
    %c0_36 = arith.constant 0 : index
    %c28 = arith.constant 28 : index
    %31 = vector.load %arg6[%c0_36, %c28] : memref<128x64xbf16, #tpu.memory_space<vmem>>, vector<128x4xbf16>
    tpu.vector_store %arg6[%c0_36, %c28], %30 {strides = array<i32>} : memref<128x64xbf16, #tpu.memory_space<vmem>>, vector<128x4xbf16>,
    %c0_37 = arith.constant 0 : index
    %c1_38 = arith.constant 1 : index
    %c0_39 = arith.constant 0 : index
    %c0_40 = arith.constant 0 : index
    %32 = vector.load %arg3[%c0_37, %c1_38, %c0_39, %c0_40] : memref<4x9x17x4xbf16, #tpu.memory_space<vmem>>, vector<1x8x16x4xbf16>
    %33 = vector.shape_cast %32 : vector<1x8x16x4xbf16> to vector<8x16x4xbf16>
    %34 = vector.shape_cast %33 : vector<8x16x4xbf16> to vector<128x4xbf16>
    %c0_41 = arith.constant 0 : index
    %c32 = arith.constant 32 : index
    %35 = vector.load %arg6[%c0_41, %c32] : memref<128x64xbf16, #tpu.memory_space<vmem>>, vector<128x4xbf16>
    tpu.vector_store %arg6[%c0_41, %c32], %34 {strides = array<i32>} : memref<128x64xbf16, #tpu.memory_space<vmem>>, vector<128x4xbf16>,
    %c1_42 = arith.constant 1 : index
    %c1_43 = arith.constant 1 : index
    %c0_44 = arith.constant 0 : index
    %c0_45 = arith.constant 0 : index
    %36 = vector.load %arg3[%c1_42, %c1_43, %c0_44, %c0_45] : memref<4x9x17x4xbf16, #tpu.memory_space<vmem>>, vector<1x8x16x4xbf16>
    %37 = vector.shape_cast %36 : vector<1x8x16x4xbf16> to vector<8x16x4xbf16>
    %38 = vector.shape_cast %37 : vector<8x16x4xbf16> to vector<128x4xbf16>
    %c0_46 = arith.constant 0 : index
    %c36 = arith.constant 36 : index
    %39 = vector.load %arg6[%c0_46, %c36] : memref<128x64xbf16, #tpu.memory_space<vmem>>, vector<128x4xbf16>
    tpu.vector_store %arg6[%c0_46, %c36], %38 {strides = array<i32>} : memref<128x64xbf16, #tpu.memory_space<vmem>>, vector<128x4xbf16>,
    %c0_47 = arith.constant 0 : index
    %c1_48 = arith.constant 1 : index
    %c1_49 = arith.constant 1 : index
    %c0_50 = arith.constant 0 : index
    %40 = vector.load %arg3[%c0_47, %c1_48, %c1_49, %c0_50] : memref<4x9x17x4xbf16, #tpu.memory_space<vmem>>, vector<1x8x16x4xbf16>
    %41 = vector.shape_cast %40 : vector<1x8x16x4xbf16> to vector<8x16x4xbf16>
    %42 = vector.shape_cast %41 : vector<8x16x4xbf16> to vector<128x4xbf16>
    %c0_51 = arith.constant 0 : index
    %c40 = arith.constant 40 : index
    %43 = vector.load %arg6[%c0_51, %c40] : memref<128x64xbf16, #tpu.memory_space<vmem>>, vector<128x4xbf16>
    tpu.vector_store %arg6[%c0_51, %c40], %42 {strides = array<i32>} : memref<128x64xbf16, #tpu.memory_space<vmem>>, vector<128x4xbf16>,
    %c1_52 = arith.constant 1 : index
    %c1_53 = arith.constant 1 : index
    %c1_54 = arith.constant 1 : index
    %c0_55 = arith.constant 0 : index
    %44 = vector.load %arg3[%c1_52, %c1_53, %c1_54, %c0_55] : memref<4x9x17x4xbf16, #tpu.memory_space<vmem>>, vector<1x8x16x4xbf16>
    %45 = vector.shape_cast %44 : vector<1x8x16x4xbf16> to vector<8x16x4xbf16>
    %46 = vector.shape_cast %45 : vector<8x16x4xbf16> to vector<128x4xbf16>
    %c0_56 = arith.constant 0 : index
    %c44 = arith.constant 44 : index
    %47 = vector.load %arg6[%c0_56, %c44] : memref<128x64xbf16, #tpu.memory_space<vmem>>, vector<128x4xbf16>
    tpu.vector_store %arg6[%c0_56, %c44], %46 {strides = array<i32>} : memref<128x64xbf16, #tpu.memory_space<vmem>>, vector<128x4xbf16>,
    %c2_57 = arith.constant 2 : index
    %c1_58 = arith.constant 1 : index
    %c0_59 = arith.constant 0 : index
    %c0_60 = arith.constant 0 : index
    %48 = vector.load %arg3[%c2_57, %c1_58, %c0_59, %c0_60] : memref<4x9x17x4xbf16, #tpu.memory_space<vmem>>, vector<1x8x16x4xbf16>
    %49 = vector.shape_cast %48 : vector<1x8x16x4xbf16> to vector<8x16x4xbf16>
    %50 = vector.shape_cast %49 : vector<8x16x4xbf16> to vector<128x4xbf16>
    %c0_61 = arith.constant 0 : index
    %c48 = arith.constant 48 : index
    %51 = vector.load %arg6[%c0_61, %c48] : memref<128x64xbf16, #tpu.memory_space<vmem>>, vector<128x4xbf16>
    tpu.vector_store %arg6[%c0_61, %c48], %50 {strides = array<i32>} : memref<128x64xbf16, #tpu.memory_space<vmem>>, vector<128x4xbf16>,
    %c3_62 = arith.constant 3 : index
    %c1_63 = arith.constant 1 : index
    %c0_64 = arith.constant 0 : index
    %c0_65 = arith.constant 0 : index
    %52 = vector.load %arg3[%c3_62, %c1_63, %c0_64, %c0_65] : memref<4x9x17x4xbf16, #tpu.memory_space<vmem>>, vector<1x8x16x4xbf16>
    %53 = vector.shape_cast %52 : vector<1x8x16x4xbf16> to vector<8x16x4xbf16>
    %54 = vector.shape_cast %53 : vector<8x16x4xbf16> to vector<128x4xbf16>
    %c0_66 = arith.constant 0 : index
    %c52 = arith.constant 52 : index
    %55 = vector.load %arg6[%c0_66, %c52] : memref<128x64xbf16, #tpu.memory_space<vmem>>, vector<128x4xbf16>
    tpu.vector_store %arg6[%c0_66, %c52], %54 {strides = array<i32>} : memref<128x64xbf16, #tpu.memory_space<vmem>>, vector<128x4xbf16>,
    %c2_67 = arith.constant 2 : index
    %c1_68 = arith.constant 1 : index
    %c1_69 = arith.constant 1 : index
    %c0_70 = arith.constant 0 : index
    %56 = vector.load %arg3[%c2_67, %c1_68, %c1_69, %c0_70] : memref<4x9x17x4xbf16, #tpu.memory_space<vmem>>, vector<1x8x16x4xbf16>
    %57 = vector.shape_cast %56 : vector<1x8x16x4xbf16> to vector<8x16x4xbf16>
    %58 = vector.shape_cast %57 : vector<8x16x4xbf16> to vector<128x4xbf16>
    %c0_71 = arith.constant 0 : index
    %c56 = arith.constant 56 : index
    %59 = vector.load %arg6[%c0_71, %c56] : memref<128x64xbf16, #tpu.memory_space<vmem>>, vector<128x4xbf16>
    tpu.vector_store %arg6[%c0_71, %c56], %58 {strides = array<i32>} : memref<128x64xbf16, #tpu.memory_space<vmem>>, vector<128x4xbf16>,
    %c3_72 = arith.constant 3 : index
    %c1_73 = arith.constant 1 : index
    %c1_74 = arith.constant 1 : index
    %c0_75 = arith.constant 0 : index
    %60 = vector.load %arg3[%c3_72, %c1_73, %c1_74, %c0_75] : memref<4x9x17x4xbf16, #tpu.memory_space<vmem>>, vector<1x8x16x4xbf16>
    %61 = vector.shape_cast %60 : vector<1x8x16x4xbf16> to vector<8x16x4xbf16>
    %62 = vector.shape_cast %61 : vector<8x16x4xbf16> to vector<128x4xbf16>
    %c0_76 = arith.constant 0 : index
    %c60 = arith.constant 60 : index
    %63 = vector.load %arg6[%c0_76, %c60] : memref<128x64xbf16, #tpu.memory_space<vmem>>, vector<128x4xbf16>
    tpu.vector_store %arg6[%c0_76, %c60], %62 {strides = array<i32>} : memref<128x64xbf16, #tpu.memory_space<vmem>>, vector<128x4xbf16>,
    %c0_77 = arith.constant 0 : index
    %c0_78 = arith.constant 0 : index
    %64 = vector.load %arg6[%c0_77, %c0_78] : memref<128x64xbf16, #tpu.memory_space<vmem>>, vector<128x64xbf16>
    %c0_79 = arith.constant 0 : index
    %c0_80 = arith.constant 0 : index
    %65 = vector.load %arg4[%c0_79, %c0_80] : memref<64x8xbf16, #tpu.memory_space<vmem>>, vector<64x8xbf16>
    %cst = arith.constant dense<0.000000e+00> : vector<128x8xf32>
    %66 = tpu.matmul %64, %65, %cst {dimension_numbers = #tpu.dot_dimension_numbers<[1], [0], [0], [1], [0, 0, 1, 1], [], []>} : vector<128x64xbf16>, vector<64x8xbf16>, vector<128x8xf32> -> vector<128x8xf32>
    %cst_81 = arith.constant 0.000000e+00 : f32
    %67 = vector.broadcast %cst_81 : f32 to vector<128x8xf32>
    %68 = arith.cmpf oge, %66, %67 : vector<128x8xf32>
    %cst_82 = arith.constant 2.000000e-01 : f32
    %69 = vector.broadcast %cst_82 : f32 to vector<128x8xf32>
    %70 = arith.mulf %69, %66 : vector<128x8xf32>
    %71 = arith.select %68, %66, %70 : vector<128x8xi1>, vector<128x8xf32>
    %72 = vector.shape_cast %71 : vector<128x8xf32> to vector<1x8x16x8xf32>
    %c0_83 = arith.constant 0 : index
    %c0_84 = arith.constant 0 : index
    %c0_85 = arith.constant 0 : index
    %c0_86 = arith.constant 0 : index
    %73 = vector.load %arg5[%c0_83, %c0_84, %c0_85, %c0_86] : memref<1x8x16x8xf32, #tpu.memory_space<vmem>>, vector<1x8x16x8xf32>
    tpu.vector_store %arg5[%c0_83, %c0_84, %c0_85, %c0_86], %72 {strides = array<i32>} : memref<1x8x16x8xf32, #tpu.memory_space<vmem>>, vector<1x8x16x8xf32>,
    return
  }
  func.func @transform_0(%arg0: i32, %arg1: i32, %arg2: i32) -> (i32, i32, i32, i32) {
    %c1_i32 = arith.constant 1 : i32
    %0 = arith.muli %arg0, %c1_i32 : i32
    %1 = arith.addi %0, %arg1 : i32
    %c0_i32 = arith.constant 0 : i32
    %c0_i32_0 = arith.constant 0 : i32
    %c0_i32_1 = arith.constant 0 : i32
    %c0_i32_2 = arith.constant 0 : i32
    return %1, %c0_i32, %c0_i32_0, %c0_i32_1 : i32, i32, i32, i32
  }
  func.func @transform_1(%arg0: i32, %arg1: i32, %arg2: i32) -> (i32, i32) {
    %c0_i32 = arith.constant 0 : i32
    %c0_i32_0 = arith.constant 0 : i32
    return %c0_i32, %arg2 : i32, i32
  }
  func.func @transform_2(%arg0: i32, %arg1: i32, %arg2: i32) -> (i32, i32, i32, i32) {
    %c0_i32 = arith.constant 0 : i32
    %c0_i32_0 = arith.constant 0 : i32
    return %arg0, %arg1, %c0_i32, %arg2 : i32, i32, i32, i32
  }
}

</mosaic_0001>

<llo_original>
// kernel: tpu_custom_call.1
$region0: #{tpu_custom_call.1}
  #allocation0 [shape = 'u32[]', space=smem, size = 0x4, offset = 0x4, fixed_abs, tag = 'smem constant byte address 0x4 - core index']
  #allocation1 [shape = 'u32[144,128]{1,0:T(1,128)}', space=vmem, size = 0x12000, scoped, tag = 'internal scratch']
  #allocation2 [shape = 'bf16[128,64]{1,0:T(16,128)(2,1)}', space=vmem, size = 0x8000, scoped, tag = 'scratch operand']
  %s0 = inlined_call_operand.vmem [shape: bf16[8,9,17,4], index: 0, kind: input, shape index: {}]
  %s1 = inlined_call_operand.vmem [shape: bf16[64,8], index: 1, kind: input, shape index: {}]
  %s2 = inlined_call_operand.vmem [shape: f32[2,8,16,8], index: 2, kind: output, shape index: {}]
  %s3 = sld [smem:[#allocation0]]
  $region41: #{tpu_custom_call.1} parent=0
    _
  %s5 = ssub.s32 1, %s3
  %s6 = scalar_select 0, %s5, %s3
  loop: start=0, step=1, limit=4
  $region2: #{tpu_custom_call.1} parent=0 // loop_pre_header
    _
  $region3: #{tpu_custom_call.1} parent=0 // loop_header
    %s8 = sphi 0, %s12
    %p9 = scmp.ge.s32.totalorder %s8, 4
    %s15 = sphi 0, %s34
    %s16 = sphi 0, %s30
    %s17 = sphi 0, %s26
    %s18 = sphi 0, %s15
    %s19 = sphi 0, %s16
    %s20 = sphi 0, %s17
    %s21 = sphi 0, %s18
    %s22 = sphi 0, %s19
    %s23 = sphi 0, %s20
    %s39 = sphi 0, %s41
    %s42 = sphi 0, %s39
    %s43 = sphi 0, %s42
    %s59 = sphi 0, %s43
    %s65 = sphi 0, %s67
    %s68 = sphi 0, %s65
    %s69 = sphi 0, %s68
    %s85 = sphi 0, %s69
    %s95 = sphi 0, %s97
    %s98 = sphi 0, %s95
    %s99 = sphi 0, %s98
    %s115 = sphi 0, %s99
  $region4: #{tpu_custom_call.1} parent=0 // loop_header_branch
    %11 = sbr.rel (%p9) target = $region8
  $region5: #{tpu_custom_call.1} parent=0 // loop_body
    %s13 = ssub.s32 %s8, 1
    %s14 = ssub.s32 %s8, 2
    %s24 = sadd.s32 1, %s17
    %p25 = scmp.ge.s32.totalorder %s24, 1
    %s26 = scalar_select %p25, 0, %s24
    %s27 = sadd.s32 1, %s16
    %s28 = scalar_select %p25, %s27, %s16
    %p29 = scmp.ge.s32.totalorder %s28, 1
    %s30 = scalar_select %p29, 0, %s28
    %s31 = sadd.s32 1, %s15
    %s32 = scalar_select %p29, %s31, %s15
    %p33 = scmp.ge.s32.totalorder %s32, 2
    %s34 = scalar_select %p33, 0, %s32
    %s35 = sadd.s32 %s15, %s16
    %s36 = sadd.s32 %s34, %s30
    %s37 = ssub.s32 %s35, %s36
    %p38 = scmp.eq.s32.totalorder %s37, 0
    %s40 = sadd.s32 %s39, 1
    %s41 = scalar_select %p38, %s39, %s40
    %p44 = pneg %p38
    %p45 = scmp.eq.s32.totalorder %s8, 1
    %p46 = por %p44, %p45
    %p47 = scmp.ne.s32.totalorder %s39, %s42
    %p48 = scmp.eq.s32.totalorder %s8, 0
    %p49 = por %p47, %p48
    %p50 = scmp.ne.s32.totalorder %s39, %s42
    %p51 = scmp.eq.s32.totalorder %s13, 1
    %p52 = por %p50, %p51
    %p53 = scmp.ne.s32.totalorder %s42, %s43
    %p54 = scmp.eq.s32.totalorder %s13, 0
    %p55 = por %p53, %p54
    %p56 = scmp.ne.s32.totalorder %s42, %s43
    %p57 = scmp.eq.s32.totalorder %s14, 1
    %p58 = por %p56, %p57
    %p60 = scmp.ne.s32.totalorder %s43, %s59
    %p61 = scmp.eq.s32.totalorder %s14, 0
    %p62 = por %p60, %p61
    %s63 = ssub.s32 %s17, %s26
    %p64 = scmp.eq.s32.totalorder %s63, 0
    %s66 = sadd.s32 %s65, 1
    %s67 = scalar_select %p64, %s65, %s66
    %p70 = pneg %p64
    %p71 = scmp.eq.s32.totalorder %s8, 1
    %p72 = por %p70, %p71
    %p73 = scmp.ne.s32.totalorder %s65, %s68
    %p74 = scmp.eq.s32.totalorder %s8, 0
    %p75 = por %p73, %p74
    %p76 = scmp.ne.s32.totalorder %s65, %s68
    %p77 = scmp.eq.s32.totalorder %s13, 1
    %p78 = por %p76, %p77
    %p79 = scmp.ne.s32.totalorder %s68, %s69
    %p80 = scmp.eq.s32.totalorder %s13, 0
    %p81 = por %p79, %p80
    %p82 = scmp.ne.s32.totalorder %s68, %s69
    %p83 = scmp.eq.s32.totalorder %s14, 1
    %p84 = por %p82, %p83
    %p86 = scmp.ne.s32.totalorder %s69, %s85
    %p87 = scmp.eq.s32.totalorder %s14, 0
    %p88 = por %p86, %p87
    %s89 = ssub.s32 %s15, %s34
    %s90 = ssub.s32 %s16, %s30
    %s91 = sor.u32 %s89, %s90
    %s92 = ssub.s32 %s17, %s26
    %s93 = sor.u32 %s91, %s92
    %p94 = scmp.eq.s32.totalorder %s93, 0
    %s96 = sadd.s32 %s95, 1
    %s97 = scalar_select %p94, %s95, %s96
    %p100 = pneg %p94
    %p101 = scmp.eq.s32.totalorder %s8, 1
    %p102 = por %p100, %p101
    %p103 = scmp.ne.s32.totalorder %s95, %s98
    %p104 = scmp.eq.s32.totalorder %s8, 0
    %p105 = por %p103, %p104
    %p106 = scmp.ne.s32.totalorder %s95, %s98
    %p107 = scmp.eq.s32.totalorder %s13, 1
    %p108 = por %p106, %p107
    %p109 = scmp.ne.s32.totalorder %s98, %s99
    %p110 = scmp.eq.s32.totalorder %s13, 0
    %p111 = por %p109, %p110
    %p112 = scmp.ne.s32.totalorder %s98, %s99
    %p113 = scmp.eq.s32.totalorder %s14, 1
    %p114 = por %p112, %p113
    %p116 = scmp.ne.s32.totalorder %s99, %s115
    %p117 = scmp.eq.s32.totalorder %s14, 0
    %p118 = por %p116, %p117
    %p119 = scmp.le.s32.totalorder 1, %s8
    %p120 = scmp.lt.s32.totalorder %s8, 3
    %p121 = pnand %p119, %p120
    %p122 = pneg %p121
    // Predicated region
    $region9: #{tpu_custom_call.1} parent=5 // pred_check
      _
    $region10: #{tpu_custom_call.1} parent=5 // pred_check_branch
      %124 = sbr.rel (%p121) target = $region12
    $region11: #{tpu_custom_call.1} parent=5 // pred_region
      %s125 = ssub.s32 %s8, 1
      // Predicated region
      $region13: #{tpu_custom_call.1} parent=11 // pred_check
        %p126 = pneg %p81
      $region14: #{tpu_custom_call.1} parent=11 // pred_check_branch
        %128 = sbr.rel (%p126) target = $region16
      $region15: #{tpu_custom_call.1} parent=11 // pred_region
        %p129 = scmp.lt.s32.totalorder %s20, 0
        %s130 = scalar_select %p129, %s20, 0
        %s131 = smul.addr %s130, 4
        %s132 = scalar_lea.vmem %s1, %s131
      $region16: #{tpu_custom_call.1} parent=11 // pred_fallthru
        _
    $region12: #{tpu_custom_call.1} parent=5 // pred_fallthru
      _
    %p133 = scmp.lt.s32.totalorder %s8, 2
    // Predicated region
    $region17: #{tpu_custom_call.1} parent=5 // pred_check
      %p134 = pneg %p133
    $region18: #{tpu_custom_call.1} parent=5 // pred_check_branch
      %136 = sbr.rel (%p134) target = $region20
    $region19: #{tpu_custom_call.1} parent=5 // pred_region
      // Predicated region
      $region21: #{tpu_custom_call.1} parent=19 // pred_check
        %p137 = pneg %p49
      $region22: #{tpu_custom_call.1} parent=19 // pred_check_branch
        %139 = sbr.rel (%p137) target = $region24
      $region23: #{tpu_custom_call.1} parent=19 // pred_region
        %s140 = sadd.s32 %s15, %s16
        %s141 = smul.u32 4, %s140
        %p142 = scmp.lt.s32.totalorder %s141, 7
        %s143 = scalar_select %p142, %s141, 7
        %s144 = smul.addr %s143, 27
        %s145 = smul.addr %s144, 4
        %s146 = scalar_lea.vmem %s0, %s145
        %s147 = sadd.s32 %s15, %s16
        %s148 = smul.u32 4, %s147
      $region24: #{tpu_custom_call.1} parent=19 // pred_fallthru
        _
    $region20: #{tpu_custom_call.1} parent=5 // pred_fallthru
      _
    %p149 = scmp.le.s32.totalorder 1, %s8
    %p150 = scmp.lt.s32.totalorder %s8, 3
    %p151 = pnand %p149, %p150
    %p152 = pneg %p151
    // Predicated region
    $region25: #{tpu_custom_call.1} parent=5 // pred_check
      _
    $region26: #{tpu_custom_call.1} parent=5 // pred_check_branch
      %154 = sbr.rel (%p151) target = $region28
    $region27: #{tpu_custom_call.1} parent=5 // pred_region
      %s155 = ssub.s32 %s8, 1
      %s156 = sadd.s32 %s18, %s19
      %s157 = smul.u32 4, %s156
      %p158 = scmp.lt.s32.totalorder %s157, 7
      %s159 = scalar_select %p158, %s157, 7
      %s160 = smul.addr %s159, 27
      %s161 = smul.addr %s160, 4
      %s162 = scalar_lea.vmem %s0, %s161
      %p163 = pneg %p55
      %p164 = pneg %p52
      %p165 = scmp.lt.s32.totalorder %s20, 0
      %s166 = scalar_select %p165, %s20, 0
      %s167 = smul.addr %s166, 4
      %s168 = scalar_lea.vmem %s1, %s167
      %p169 = pneg %p81
      %p170 = pneg %p78
      %p171 = pneg %p111
      %p172 = pneg %p108
      %s173 = smul.u32 8, %s19
      %p174 = scmp.lt.s32.totalorder %s18, 1
      %s175 = scalar_select %p174, %s18, 1
      %p176 = scmp.lt.s32.totalorder %s173, 7
      %s177 = scalar_select %p176, %s173, 7
      %p178 = scmp.lt.s32.totalorder %s20, 0
      %s179 = scalar_select %p178, %s20, 0
      %s180 = smul.addr %s177, 2
      %s181 = sadd.s32 %s179, %s180
      %s182 = smul.addr %s175, 16
      %s183 = sadd.s32 %s181, %s182
      %s184 = smul.addr %s183, 8
      %s185 = scalar_lea.vmem %s2, %s184
      %s186 = sadd.s32 %s18, %s19
      %s187 = smul.u32 4, %s186
      %p188 = scmp.lt.s32.totalorder %s187, 7
      %s189 = scalar_select %p188, %s187, 7
      %s190 = smul.addr %s189, 27
      %s191 = smul.addr %s190, 4
      %s192 = scalar_lea.vmem %s0, %s191
      %s193 = sadd.s32 %s18, %s19
      %s194 = smul.u32 4, %s193
      %p195 = scmp.lt.s32.totalorder %s20, 0
      %s196 = scalar_select %p195, %s20, 0
      %s197 = smul.addr %s196, 4
      %s198 = scalar_lea.vmem %s1, %s197
      %s199 = smul.u32 8, %s19
      %p200 = scmp.lt.s32.totalorder %s18, 1
      %s201 = scalar_select %p200, %s18, 1
      %p202 = scmp.lt.s32.totalorder %s199, 7
      %s203 = scalar_select %p202, %s199, 7
      %p204 = scmp.lt.s32.totalorder %s20, 0
      %s205 = scalar_select %p204, %s20, 0
      %s206 = smul.addr %s203, 2
      %s207 = sadd.s32 %s205, %s206
      %s208 = smul.addr %s201, 16
      %s209 = sadd.s32 %s207, %s208
      %s210 = smul.addr %s209, 8
      %s211 = scalar_lea.vmem %s2, %s210
      %s212 = smul.u32 8, %s19
      %v214 = vld [vmem:[%s192] sm:$0xf]
      %v215 = vld [vmem:[%s192 + $0x4] sm:$0xf]
      %v216 = vld [vmem:[%s192 + $0xc] sm:$0xf]
      %v217 = vld [vmem:[%s192 + $0x10] sm:$0xf]
      %v218 = vld [vmem:[%s192 + $0x18] sm:$0xf]
      %v219 = vld [vmem:[%s192 + $0x1c] sm:$0xf]
      %v220 = vld [vmem:[%s192 + $0x24] sm:$0xf]
      %v221 = vld [vmem:[%s192 + $0x28] sm:$0xf]
      %v222 = vld [vmem:[%s192 + $0x30] sm:$0xf]
      %v223 = vld [vmem:[%s192 + $0x34] sm:$0xf]
      %v224 = vld [vmem:[%s192 + $0x3c] sm:$0xf]
      %v225 = vld [vmem:[%s192 + $0x40] sm:$0xf]
      %v226 = vld [vmem:[%s192 + $0x48] sm:$0xf]
      %v227 = vld [vmem:[%s192 + $0x4c] sm:$0xf]
      %v228 = vld [vmem:[%s192 + $0x54] sm:$0xf]
      %v229 = vld [vmem:[%s192 + $0x58] sm:$0xf]
      %v246 = vunpack.c.l.b16 %v214
      %v247 = vunpack.c.l.b16 %v215
      %v248 = vunpack.c.l.b16 %v216
      %v249 = vunpack.c.l.b16 %v217
      %v250 = vunpack.c.l.b16 %v218
      %v251 = vunpack.c.l.b16 %v219
      %v252 = vunpack.c.l.b16 %v220
      %v253 = vunpack.c.l.b16 %v221
      %v254 = vunpack.c.l.b16 %v222
      %v255 = vunpack.c.l.b16 %v223
      %v256 = vunpack.c.l.b16 %v224
      %v257 = vunpack.c.l.b16 %v225
      %v258 = vunpack.c.l.b16 %v226
      %v259 = vunpack.c.l.b16 %v227
      %v260 = vunpack.c.l.b16 %v228
      %v261 = vunpack.c.l.b16 %v229
      %v262 = vpack.c.b16 %v247, %v246
      %v263 = vpack.c.b16 %v249, %v248
      %v264 = vpack.c.b16 %v251, %v250
      %v265 = vpack.c.b16 %v253, %v252
      %v266 = vpack.c.b16 %v255, %v254
      %v267 = vpack.c.b16 %v257, %v256
      %v268 = vpack.c.b16 %v259, %v258
      %v269 = vpack.c.b16 %v261, %v260
      %vm278 = vcmask 31744
      %279 = vst.msk [vmem:[#allocation2] sm:$0xff] %vm278, %v262
      %280 = vst.msk [vmem:[#allocation2 + $0x8] sm:$0xff] %vm278, %v263
      %281 = vst.msk [vmem:[#allocation2 + $0x10] sm:$0xff] %vm278, %v264
      %282 = vst.msk [vmem:[#allocation2 + $0x18] sm:$0xff] %vm278, %v265
      %283 = vst.msk [vmem:[#allocation2 + $0x20] sm:$0xff] %vm278, %v266
      %284 = vst.msk [vmem:[#allocation2 + $0x28] sm:$0xff] %vm278, %v267
      %285 = vst.msk [vmem:[#allocation2 + $0x30] sm:$0xff] %vm278, %v268
      %286 = vst.msk [vmem:[#allocation2 + $0x38] sm:$0xff] %vm278, %v269
      %s287 = scalar_lea.vmem %s192, 108
      %v288 = vld [vmem:[%s287] sm:$0xf]
      %v289 = vld [vmem:[%s287 + $0x4] sm:$0xf]
      %v290 = vld [vmem:[%s287 + $0xc] sm:$0xf]
      %v291 = vld [vmem:[%s287 + $0x10] sm:$0xf]
      %v292 = vld [vmem:[%s287 + $0x18] sm:$0xf]
      %v293 = vld [vmem:[%s287 + $0x1c] sm:$0xf]
      %v294 = vld [vmem:[%s287 + $0x24] sm:$0xf]
      %v295 = vld [vmem:[%s287 + $0x28] sm:$0xf]
      %v296 = vld [vmem:[%s287 + $0x30] sm:$0xf]
      %v297 = vld [vmem:[%s287 + $0x34] sm:$0xf]
      %v298 = vld [vmem:[%s287 + $0x3c] sm:$0xf]
      %v299 = vld [vmem:[%s287 + $0x40] sm:$0xf]
      %v300 = vld [vmem:[%s287 + $0x48] sm:$0xf]
      %v301 = vld [vmem:[%s287 + $0x4c] sm:$0xf]
      %v302 = vld [vmem:[%s287 + $0x54] sm:$0xf]
      %v303 = vld [vmem:[%s287 + $0x58] sm:$0xf]
      %v320 = vunpack.c.l.b16 %v288
      %v321 = vunpack.c.l.b16 %v289
      %v322 = vunpack.c.l.b16 %v290
      %v323 = vunpack.c.l.b16 %v291
      %v324 = vunpack.c.l.b16 %v292
      %v325 = vunpack.c.l.b16 %v293
      %v326 = vunpack.c.l.b16 %v294
      %v327 = vunpack.c.l.b16 %v295
      %v328 = vunpack.c.l.b16 %v296
      %v329 = vunpack.c.l.b16 %v297
      %v330 = vunpack.c.l.b16 %v298
      %v331 = vunpack.c.l.b16 %v299
      %v332 = vunpack.c.l.b16 %v300
      %v333 = vunpack.c.l.b16 %v301
      %v334 = vunpack.c.l.b16 %v302
      %v335 = vunpack.c.l.b16 %v303
      %v336 = vpack.c.b16 %v321, %v320
      %v337 = vpack.c.b16 %v323, %v322
      %v338 = vpack.c.b16 %v325, %v324
      %v339 = vpack.c.b16 %v327, %v326
      %v340 = vpack.c.b16 %v329, %v328
      %v341 = vpack.c.b16 %v331, %v330
      %v342 = vpack.c.b16 %v333, %v332
      %v343 = vpack.c.b16 %v335, %v334
      %344 = vrot.lane.b32.xlu0 %v336, 4
      %v345 = vpop.permute.xlu0 %344
      %346 = vrot.lane.b32.xlu0 %v337, 4
      %v347 = vpop.permute.xlu0 %346
      %348 = vrot.lane.b32.xlu0 %v338, 4
      %v349 = vpop.permute.xlu0 %348
      %350 = vrot.lane.b32.xlu0 %v339, 4
      %v351 = vpop.permute.xlu0 %350
      %352 = vrot.lane.b32.xlu0 %v340, 4
      %v353 = vpop.permute.xlu0 %352
      %354 = vrot.lane.b32.xlu0 %v341, 4
      %v355 = vpop.permute.xlu0 %354
      %356 = vrot.lane.b32.xlu0 %v342, 4
      %v357 = vpop.permute.xlu0 %356
      %358 = vrot.lane.b32.xlu0 %v343, 4
      %v359 = vpop.permute.xlu0 %358
      %vm368 = vcmask 64544
      %369 = vst.msk [vmem:[#allocation2] sm:$0xff] %vm368, %v345
      %370 = vst.msk [vmem:[#allocation2 + $0x8] sm:$0xff] %vm368, %v347
      %371 = vst.msk [vmem:[#allocation2 + $0x10] sm:$0xff] %vm368, %v349
      %372 = vst.msk [vmem:[#allocation2 + $0x18] sm:$0xff] %vm368, %v351
      %373 = vst.msk [vmem:[#allocation2 + $0x20] sm:$0xff] %vm368, %v353
      %374 = vst.msk [vmem:[#allocation2 + $0x28] sm:$0xff] %vm368, %v355
      %375 = vst.msk [vmem:[#allocation2 + $0x30] sm:$0xff] %vm368, %v357
      %376 = vst.msk [vmem:[#allocation2 + $0x38] sm:$0xff] %vm368, %v359
      %v377 = vld [vmem:[%s192] sm:$0xf]
      %v378 = vld [vmem:[%s192 + $0x4] sm:$0xf]
      %v379 = vld [vmem:[%s192 + $0x8] sm:$0x1]
      %v380 = vld [vmem:[%s192 + $0xc] sm:$0xf]
      %v381 = vld [vmem:[%s192 + $0x10] sm:$0xf]
      %v382 = vld [vmem:[%s192 + $0x14] sm:$0x1]
      %v383 = vld [vmem:[%s192 + $0x18] sm:$0xf]
      %v384 = vld [vmem:[%s192 + $0x1c] sm:$0xf]
      %v385 = vld [vmem:[%s192 + $0x20] sm:$0x1]
      %v386 = vld [vmem:[%s192 + $0x24] sm:$0xf]
      %v387 = vld [vmem:[%s192 + $0x28] sm:$0xf]
      %v388 = vld [vmem:[%s192 + $0x2c] sm:$0x1]
      %v389 = vld [vmem:[%s192 + $0x30] sm:$0xf]
      %v390 = vld [vmem:[%s192 + $0x34] sm:$0xf]
      %v391 = vld [vmem:[%s192 + $0x38] sm:$0x1]
      %v392 = vld [vmem:[%s192 + $0x3c] sm:$0xf]
      %v393 = vld [vmem:[%s192 + $0x40] sm:$0xf]
      %v394 = vld [vmem:[%s192 + $0x44] sm:$0x1]
      %v395 = vld [vmem:[%s192 + $0x48] sm:$0xf]
      %v396 = vld [vmem:[%s192 + $0x4c] sm:$0xf]
      %v397 = vld [vmem:[%s192 + $0x50] sm:$0x1]
      %v398 = vld [vmem:[%s192 + $0x54] sm:$0xf]
      %v399 = vld [vmem:[%s192 + $0x58] sm:$0xf]
      %v400 = vld [vmem:[%s192 + $0x5c] sm:$0x1]
      %vm401 = vsmask.f32 3328
      %vm402 = vsmask.f32 7440
      %vm403 = vmor %vm401, %vm402
      %v405 = vshrl.u32 %v377, 16
      %v407 = vrot.slane %v405, 4
      %v408 = vshll.u32 %v377, 16
      %v410 = vrot.slane %v408, 5
      %v411 = vor.u32 %v407, %v410
      %v412 = vrot.slane %v411, 4
      %v414 = vshll.u32 %v378, 16
      %v416 = vrot.slane %v414, 5
      %v417 = vsel %vm403, %v412, %v416
      %v418 = vshrl.u32 %v378, 16
      %v420 = vrot.slane %v418, 4
      %v421 = vor.u32 %v420, %v416
      %v422 = vrot.slane %v421, 4
      %v424 = vshll.u32 %v379, 16
      %v426 = vrot.slane %v424, 5
      %v427 = vsel %vm403, %v422, %v426
      %v429 = vshrl.u32 %v380, 16
      %v431 = vrot.slane %v429, 4
      %v432 = vshll.u32 %v380, 16
      %v434 = vrot.slane %v432, 5
      %v435 = vor.u32 %v431, %v434
      %v436 = vrot.slane %v435, 4
      %v438 = vshll.u32 %v381, 16
      %v440 = vrot.slane %v438, 5
      %v441 = vsel %vm403, %v436, %v440
      %v442 = vshrl.u32 %v381, 16
      %v444 = vrot.slane %v442, 4
      %v445 = vor.u32 %v444, %v440
      %v446 = vrot.slane %v445, 4
      %v448 = vshll.u32 %v382, 16
      %v450 = vrot.slane %v448, 5
      %v451 = vsel %vm403, %v446, %v450
      %v453 = vshrl.u32 %v383, 16
      %v455 = vrot.slane %v453, 4
      %v456 = vshll.u32 %v383, 16
      %v458 = vrot.slane %v456, 5
      %v459 = vor.u32 %v455, %v458
      %v460 = vrot.slane %v459, 4
      %v462 = vshll.u32 %v384, 16
      %v464 = vrot.slane %v462, 5
      %v465 = vsel %vm403, %v460, %v464
      %v466 = vshrl.u32 %v384, 16
      %v468 = vrot.slane %v466, 4
      %v469 = vor.u32 %v468, %v464
      %v470 = vrot.slane %v469, 4
      %v472 = vshll.u32 %v385, 16
      %v474 = vrot.slane %v472, 5
      %v475 = vsel %vm403, %v470, %v474
      %v477 = vshrl.u32 %v386, 16
      %v479 = vrot.slane %v477, 4
      %v480 = vshll.u32 %v386, 16
      %v482 = vrot.slane %v480, 5
      %v483 = vor.u32 %v479, %v482
      %v484 = vrot.slane %v483, 4
      %v486 = vshll.u32 %v387, 16
      %v488 = vrot.slane %v486, 5
      %v489 = vsel %vm403, %v484, %v488
      %v490 = vshrl.u32 %v387, 16
      %v492 = vrot.slane %v490, 4
      %v493 = vor.u32 %v492, %v488
      %v494 = vrot.slane %v493, 4
      %v496 = vshll.u32 %v388, 16
      %v498 = vrot.slane %v496, 5
      %v499 = vsel %vm403, %v494, %v498
      %v501 = vshrl.u32 %v389, 16
      %v503 = vrot.slane %v501, 4
      %v504 = vshll.u32 %v389, 16
      %v506 = vrot.slane %v504, 5
      %v507 = vor.u32 %v503, %v506
      %v508 = vrot.slane %v507, 4
      %v510 = vshll.u32 %v390, 16
      %v512 = vrot.slane %v510, 5
      %v513 = vsel %vm403, %v508, %v512
      %v514 = vshrl.u32 %v390, 16
      %v516 = vrot.slane %v514, 4
      %v517 = vor.u32 %v516, %v512
      %v518 = vrot.slane %v517, 4
      %v520 = vshll.u32 %v391, 16
      %v522 = vrot.slane %v520, 5
      %v523 = vsel %vm403, %v518, %v522
      %v525 = vshrl.u32 %v392, 16
      %v527 = vrot.slane %v525, 4
      %v528 = vshll.u32 %v392, 16
      %v530 = vrot.slane %v528, 5
      %v531 = vor.u32 %v527, %v530
      %v532 = vrot.slane %v531, 4
      %v534 = vshll.u32 %v393, 16
      %v536 = vrot.slane %v534, 5
      %v537 = vsel %vm403, %v532, %v536
      %v538 = vshrl.u32 %v393, 16
      %v540 = vrot.slane %v538, 4
      %v541 = vor.u32 %v540, %v536
      %v542 = vrot.slane %v541, 4
      %v544 = vshll.u32 %v394, 16
      %v546 = vrot.slane %v544, 5
      %v547 = vsel %vm403, %v542, %v546
      %v549 = vshrl.u32 %v395, 16
      %v551 = vrot.slane %v549, 4
      %v552 = vshll.u32 %v395, 16
      %v554 = vrot.slane %v552, 5
      %v555 = vor.u32 %v551, %v554
      %v556 = vrot.slane %v555, 4
      %v558 = vshll.u32 %v396, 16
      %v560 = vrot.slane %v558, 5
      %v561 = vsel %vm403, %v556, %v560
      %v562 = vshrl.u32 %v396, 16
      %v564 = vrot.slane %v562, 4
      %v565 = vor.u32 %v564, %v560
      %v566 = vrot.slane %v565, 4
      %v568 = vshll.u32 %v397, 16
      %v570 = vrot.slane %v568, 5
      %v571 = vsel %vm403, %v566, %v570
      %v573 = vshrl.u32 %v398, 16
      %v575 = vrot.slane %v573, 4
      %v576 = vshll.u32 %v398, 16
      %v578 = vrot.slane %v576, 5
      %v579 = vor.u32 %v575, %v578
      %v580 = vrot.slane %v579, 4
      %v582 = vshll.u32 %v399, 16
      %v584 = vrot.slane %v582, 5
      %v585 = vsel %vm403, %v580, %v584
      %v586 = vshrl.u32 %v399, 16
      %v588 = vrot.slane %v586, 4
      %v589 = vor.u32 %v588, %v584
      %v590 = vrot.slane %v589, 4
      %v592 = vshll.u32 %v400, 16
      %v594 = vrot.slane %v592, 5
      %v595 = vsel %vm403, %v590, %v594
      %v596 = vunpack.c.l.b16 %v417
      %v597 = vunpack.c.l.b16 %v427
      %v598 = vunpack.c.l.b16 %v441
      %v599 = vunpack.c.l.b16 %v451
      %v600 = vunpack.c.l.b16 %v465
      %v601 = vunpack.c.l.b16 %v475
      %v602 = vunpack.c.l.b16 %v489
      %v603 = vunpack.c.l.b16 %v499
      %v604 = vunpack.c.l.b16 %v513
      %v605 = vunpack.c.l.b16 %v523
      %v606 = vunpack.c.l.b16 %v537
      %v607 = vunpack.c.l.b16 %v547
      %v608 = vunpack.c.l.b16 %v561
      %v609 = vunpack.c.l.b16 %v571
      %v610 = vunpack.c.l.b16 %v585
      %v611 = vunpack.c.l.b16 %v595
      %v612 = vpack.c.b16 %v597, %v596
      %v613 = vpack.c.b16 %v599, %v598
      %v614 = vpack.c.b16 %v601, %v600
      %v615 = vpack.c.b16 %v603, %v602
      %v616 = vpack.c.b16 %v605, %v604
      %v617 = vpack.c.b16 %v607, %v606
      %v618 = vpack.c.b16 %v609, %v608
      %v619 = vpack.c.b16 %v611, %v610
      %620 = vrot.lane.b32.xlu0 %v612, 8
      %v621 = vpop.permute.xlu0 %620
      %622 = vrot.lane.b32.xlu0 %v613, 8
      %v623 = vpop.permute.xlu0 %622
      %624 = vrot.lane.b32.xlu0 %v614, 8
      %v625 = vpop.permute.xlu0 %624
      %626 = vrot.lane.b32.xlu0 %v615, 8
      %v627 = vpop.permute.xlu0 %626
      %628 = vrot.lane.b32.xlu0 %v616, 8
      %v629 = vpop.permute.xlu0 %628
      %630 = vrot.lane.b32.xlu0 %v617, 8
      %v631 = vpop.permute.xlu0 %630
      %632 = vrot.lane.b32.xlu0 %v618, 8
      %v633 = vpop.permute.xlu0 %632
      %634 = vrot.lane.b32.xlu0 %v619, 8
      %v635 = vpop.permute.xlu0 %634
      %vm644 = vcmask 97344
      %645 = vst.msk [vmem:[#allocation2] sm:$0xff] %vm644, %v621
      %646 = vst.msk [vmem:[#allocation2 + $0x8] sm:$0xff] %vm644, %v623
      %647 = vst.msk [vmem:[#allocation2 + $0x10] sm:$0xff] %vm644, %v625
      %648 = vst.msk [vmem:[#allocation2 + $0x18] sm:$0xff] %vm644, %v627
      %649 = vst.msk [vmem:[#allocation2 + $0x20] sm:$0xff] %vm644, %v629
      %650 = vst.msk [vmem:[#allocation2 + $0x28] sm:$0xff] %vm644, %v631
      %651 = vst.msk [vmem:[#allocation2 + $0x30] sm:$0xff] %vm644, %v633
      %652 = vst.msk [vmem:[#allocation2 + $0x38] sm:$0xff] %vm644, %v635
      %v653 = vld [vmem:[%s287] sm:$0xf]
      %v654 = vld [vmem:[%s287 + $0x4] sm:$0xf]
      %v655 = vld [vmem:[%s287 + $0x8] sm:$0x1]
      %v656 = vld [vmem:[%s287 + $0xc] sm:$0xf]
      %v657 = vld [vmem:[%s287 + $0x10] sm:$0xf]
      %v658 = vld [vmem:[%s287 + $0x14] sm:$0x1]
      %v659 = vld [vmem:[%s287 + $0x18] sm:$0xf]
      %v660 = vld [vmem:[%s287 + $0x1c] sm:$0xf]
      %v661 = vld [vmem:[%s287 + $0x20] sm:$0x1]
      %v662 = vld [vmem:[%s287 + $0x24] sm:$0xf]
      %v663 = vld [vmem:[%s287 + $0x28] sm:$0xf]
      %v664 = vld [vmem:[%s287 + $0x2c] sm:$0x1]
      %v665 = vld [vmem:[%s287 + $0x30] sm:$0xf]
      %v666 = vld [vmem:[%s287 + $0x34] sm:$0xf]
      %v667 = vld [vmem:[%s287 + $0x38] sm:$0x1]
      %v668 = vld [vmem:[%s287 + $0x3c] sm:$0xf]
      %v669 = vld [vmem:[%s287 + $0x40] sm:$0xf]
      %v670 = vld [vmem:[%s287 + $0x44] sm:$0x1]
      %v671 = vld [vmem:[%s287 + $0x48] sm:$0xf]
      %v672 = vld [vmem:[%s287 + $0x4c] sm:$0xf]
      %v673 = vld [vmem:[%s287 + $0x50] sm:$0x1]
      %v674 = vld [vmem:[%s287 + $0x54] sm:$0xf]
      %v675 = vld [vmem:[%s287 + $0x58] sm:$0xf]
      %v676 = vld [vmem:[%s287 + $0x5c] sm:$0x1]
      %v678 = vshrl.u32 %v653, 16
      %v680 = vrot.slane %v678, 4
      %v681 = vshll.u32 %v653, 16
      %v683 = vrot.slane %v681, 5
      %v684 = vor.u32 %v680, %v683
      %v685 = vrot.slane %v684, 4
      %v687 = vshll.u32 %v654, 16
      %v689 = vrot.slane %v687, 5
      %v690 = vsel %vm403, %v685, %v689
      %v691 = vshrl.u32 %v654, 16
      %v693 = vrot.slane %v691, 4
      %v694 = vor.u32 %v693, %v689
      %v695 = vrot.slane %v694, 4
      %v697 = vshll.u32 %v655, 16
      %v699 = vrot.slane %v697, 5
      %v700 = vsel %vm403, %v695, %v699
      %v702 = vshrl.u32 %v656, 16
      %v704 = vrot.slane %v702, 4
      %v705 = vshll.u32 %v656, 16
      %v707 = vrot.slane %v705, 5
      %v708 = vor.u32 %v704, %v707
      %v709 = vrot.slane %v708, 4
      %v711 = vshll.u32 %v657, 16
      %v713 = vrot.slane %v711, 5
      %v714 = vsel %vm403, %v709, %v713
      %v715 = vshrl.u32 %v657, 16
      %v717 = vrot.slane %v715, 4
      %v718 = vor.u32 %v717, %v713
      %v719 = vrot.slane %v718, 4
      %v721 = vshll.u32 %v658, 16
      %v723 = vrot.slane %v721, 5
      %v724 = vsel %vm403, %v719, %v723
      %v726 = vshrl.u32 %v659, 16
      %v728 = vrot.slane %v726, 4
      %v729 = vshll.u32 %v659, 16
      %v731 = vrot.slane %v729, 5
      %v732 = vor.u32 %v728, %v731
      %v733 = vrot.slane %v732, 4
      %v735 = vshll.u32 %v660, 16
      %v737 = vrot.slane %v735, 5
      %v738 = vsel %vm403, %v733, %v737
      %v739 = vshrl.u32 %v660, 16
      %v741 = vrot.slane %v739, 4
      %v742 = vor.u32 %v741, %v737
      %v743 = vrot.slane %v742, 4
      %v745 = vshll.u32 %v661, 16
      %v747 = vrot.slane %v745, 5
      %v748 = vsel %vm403, %v743, %v747
      %v750 = vshrl.u32 %v662, 16
      %v752 = vrot.slane %v750, 4
      %v753 = vshll.u32 %v662, 16
      %v755 = vrot.slane %v753, 5
      %v756 = vor.u32 %v752, %v755
      %v757 = vrot.slane %v756, 4
      %v759 = vshll.u32 %v663, 16
      %v761 = vrot.slane %v759, 5
      %v762 = vsel %vm403, %v757, %v761
      %v763 = vshrl.u32 %v663, 16
      %v765 = vrot.slane %v763, 4
      %v766 = vor.u32 %v765, %v761
      %v767 = vrot.slane %v766, 4
      %v769 = vshll.u32 %v664, 16
      %v771 = vrot.slane %v769, 5
      %v772 = vsel %vm403, %v767, %v771
      %v774 = vshrl.u32 %v665, 16
      %v776 = vrot.slane %v774, 4
      %v777 = vshll.u32 %v665, 16
      %v779 = vrot.slane %v777, 5
      %v780 = vor.u32 %v776, %v779
      %v781 = vrot.slane %v780, 4
      %v783 = vshll.u32 %v666, 16
      %v785 = vrot.slane %v783, 5
      %v786 = vsel %vm403, %v781, %v785
      %v787 = vshrl.u32 %v666, 16
      %v789 = vrot.slane %v787, 4
      %v790 = vor.u32 %v789, %v785
      %v791 = vrot.slane %v790, 4
      %v793 = vshll.u32 %v667, 16
      %v795 = vrot.slane %v793, 5
      %v796 = vsel %vm403, %v791, %v795
      %v798 = vshrl.u32 %v668, 16
      %v800 = vrot.slane %v798, 4
      %v801 = vshll.u32 %v668, 16
      %v803 = vrot.slane %v801, 5
      %v804 = vor.u32 %v800, %v803
      %v805 = vrot.slane %v804, 4
      %v807 = vshll.u32 %v669, 16
      %v809 = vrot.slane %v807, 5
      %v810 = vsel %vm403, %v805, %v809
      %v811 = vshrl.u32 %v669, 16
      %v813 = vrot.slane %v811, 4
      %v814 = vor.u32 %v813, %v809
      %v815 = vrot.slane %v814, 4
      %v817 = vshll.u32 %v670, 16
      %v819 = vrot.slane %v817, 5
      %v820 = vsel %vm403, %v815, %v819
      %v822 = vshrl.u32 %v671, 16
      %v824 = vrot.slane %v822, 4
      %v825 = vshll.u32 %v671, 16
      %v827 = vrot.slane %v825, 5
      %v828 = vor.u32 %v824, %v827
      %v829 = vrot.slane %v828, 4
      %v831 = vshll.u32 %v672, 16
      %v833 = vrot.slane %v831, 5
      %v834 = vsel %vm403, %v829, %v833
      %v835 = vshrl.u32 %v672, 16
      %v837 = vrot.slane %v835, 4
      %v838 = vor.u32 %v837, %v833
      %v839 = vrot.slane %v838, 4
      %v841 = vshll.u32 %v673, 16
      %v843 = vrot.slane %v841, 5
      %v844 = vsel %vm403, %v839, %v843
      %v846 = vshrl.u32 %v674, 16
      %v848 = vrot.slane %v846, 4
      %v849 = vshll.u32 %v674, 16
      %v851 = vrot.slane %v849, 5
      %v852 = vor.u32 %v848, %v851
      %v853 = vrot.slane %v852, 4
      %v855 = vshll.u32 %v675, 16
      %v857 = vrot.slane %v855, 5
      %v858 = vsel %vm403, %v853, %v857
      %v859 = vshrl.u32 %v675, 16
      %v861 = vrot.slane %v859, 4
      %v862 = vor.u32 %v861, %v857
      %v863 = vrot.slane %v862, 4
      %v865 = vshll.u32 %v676, 16
      %v867 = vrot.slane %v865, 5
      %v868 = vsel %vm403, %v863, %v867
      %v869 = vunpack.c.l.b16 %v690
      %v870 = vunpack.c.l.b16 %v700
      %v871 = vunpack.c.l.b16 %v714
      %v872 = vunpack.c.l.b16 %v724
      %v873 = vunpack.c.l.b16 %v738
      %v874 = vunpack.c.l.b16 %v748
      %v875 = vunpack.c.l.b16 %v762
      %v876 = vunpack.c.l.b16 %v772
      %v877 = vunpack.c.l.b16 %v786
      %v878 = vunpack.c.l.b16 %v796
      %v879 = vunpack.c.l.b16 %v810
      %v880 = vunpack.c.l.b16 %v820
      %v881 = vunpack.c.l.b16 %v834
      %v882 = vunpack.c.l.b16 %v844
      %v883 = vunpack.c.l.b16 %v858
      %v884 = vunpack.c.l.b16 %v868
      %v885 = vpack.c.b16 %v870, %v869
      %v886 = vpack.c.b16 %v872, %v871
      %v887 = vpack.c.b16 %v874, %v873
      %v888 = vpack.c.b16 %v876, %v875
      %v889 = vpack.c.b16 %v878, %v877
      %v890 = vpack.c.b16 %v880, %v879
      %v891 = vpack.c.b16 %v882, %v881
      %v892 = vpack.c.b16 %v884, %v883
      %893 = vrot.lane.b32.xlu0 %v885, 12
      %v894 = vpop.permute.xlu0 %893
      %895 = vrot.lane.b32.xlu0 %v886, 12
      %v896 = vpop.permute.xlu0 %895
      %897 = vrot.lane.b32.xlu0 %v887, 12
      %v898 = vpop.permute.xlu0 %897
      %899 = vrot.lane.b32.xlu0 %v888, 12
      %v900 = vpop.permute.xlu0 %899
      %901 = vrot.lane.b32.xlu0 %v889, 12
      %v902 = vpop.permute.xlu0 %901
      %903 = vrot.lane.b32.xlu0 %v890, 12
      %v904 = vpop.permute.xlu0 %903
      %905 = vrot.lane.b32.xlu0 %v891, 12
      %v906 = vpop.permute.xlu0 %905
      %907 = vrot.lane.b32.xlu0 %v892, 12
      %v908 = vpop.permute.xlu0 %907
      %vm917 = vcmask 130144
      %918 = vst.msk [vmem:[#allocation2] sm:$0xff] %vm917, %v894
      %919 = vst.msk [vmem:[#allocation2 + $0x8] sm:$0xff] %vm917, %v896
      %920 = vst.msk [vmem:[#allocation2 + $0x10] sm:$0xff] %vm917, %v898
      %921 = vst.msk [vmem:[#allocation2 + $0x18] sm:$0xff] %vm917, %v900
      %922 = vst.msk [vmem:[#allocation2 + $0x20] sm:$0xff] %vm917, %v902
      %923 = vst.msk [vmem:[#allocation2 + $0x28] sm:$0xff] %vm917, %v904
      %924 = vst.msk [vmem:[#allocation2 + $0x30] sm:$0xff] %vm917, %v906
      %925 = vst.msk [vmem:[#allocation2 + $0x38] sm:$0xff] %vm917, %v908
      %s926 = scalar_lea.vmem %s192, 216
      %v927 = vld [vmem:[%s926] sm:$0xf]
      %v928 = vld [vmem:[%s926 + $0x4] sm:$0xf]
      %v929 = vld [vmem:[%s926 + $0xc] sm:$0xf]
      %v930 = vld [vmem:[%s926 + $0x10] sm:$0xf]
      %v931 = vld [vmem:[%s926 + $0x18] sm:$0xf]
      %v932 = vld [vmem:[%s926 + $0x1c] sm:$0xf]
      %v933 = vld [vmem:[%s926 + $0x24] sm:$0xf]
      %v934 = vld [vmem:[%s926 + $0x28] sm:$0xf]
      %v935 = vld [vmem:[%s926 + $0x30] sm:$0xf]
      %v936 = vld [vmem:[%s926 + $0x34] sm:$0xf]
      %v937 = vld [vmem:[%s926 + $0x3c] sm:$0xf]
      %v938 = vld [vmem:[%s926 + $0x40] sm:$0xf]
      %v939 = vld [vmem:[%s926 + $0x48] sm:$0xf]
      %v940 = vld [vmem:[%s926 + $0x4c] sm:$0xf]
      %v941 = vld [vmem:[%s926 + $0x54] sm:$0xf]
      %v942 = vld [vmem:[%s926 + $0x58] sm:$0xf]
      %v959 = vunpack.c.l.b16 %v927
      %v960 = vunpack.c.l.b16 %v928
      %v961 = vunpack.c.l.b16 %v929
      %v962 = vunpack.c.l.b16 %v930
      %v963 = vunpack.c.l.b16 %v931
      %v964 = vunpack.c.l.b16 %v932
      %v965 = vunpack.c.l.b16 %v933
      %v966 = vunpack.c.l.b16 %v934
      %v967 = vunpack.c.l.b16 %v935
      %v968 = vunpack.c.l.b16 %v936
      %v969 = vunpack.c.l.b16 %v937
      %v970 = vunpack.c.l.b16 %v938
      %v971 = vunpack.c.l.b16 %v939
      %v972 = vunpack.c.l.b16 %v940
      %v973 = vunpack.c.l.b16 %v941
      %v974 = vunpack.c.l.b16 %v942
      %v975 = vpack.c.b16 %v960, %v959
      %v976 = vpack.c.b16 %v962, %v961
      %v977 = vpack.c.b16 %v964, %v963
      %v978 = vpack.c.b16 %v966, %v965
      %v979 = vpack.c.b16 %v968, %v967
      %v980 = vpack.c.b16 %v970, %v969
      %v981 = vpack.c.b16 %v972, %v971
      %v982 = vpack.c.b16 %v974, %v973
      %983 = vrot.lane.b32.xlu0 %v975, 16
      %v984 = vpop.permute.xlu0 %983
      %985 = vrot.lane.b32.xlu0 %v976, 16
      %v986 = vpop.permute.xlu0 %985
      %987 = vrot.lane.b32.xlu0 %v977, 16
      %v988 = vpop.permute.xlu0 %987
      %989 = vrot.lane.b32.xlu0 %v978, 16
      %v990 = vpop.permute.xlu0 %989
      %991 = vrot.lane.b32.xlu0 %v979, 16
      %v992 = vpop.permute.xlu0 %991
      %993 = vrot.lane.b32.xlu0 %v980, 16
      %v994 = vpop.permute.xlu0 %993
      %995 = vrot.lane.b32.xlu0 %v981, 16
      %v996 = vpop.permute.xlu0 %995
      %997 = vrot.lane.b32.xlu0 %v982, 16
      %v998 = vpop.permute.xlu0 %997
      %vm1007 = vcmask 162944
      %1008 = vst.msk [vmem:[#allocation2] sm:$0xff] %vm1007, %v984
      %1009 = vst.msk [vmem:[#allocation2 + $0x8] sm:$0xff] %vm1007, %v986
      %1010 = vst.msk [vmem:[#allocation2 + $0x10] sm:$0xff] %vm1007, %v988
      %1011 = vst.msk [vmem:[#allocation2 + $0x18] sm:$0xff] %vm1007, %v990
      %1012 = vst.msk [vmem:[#allocation2 + $0x20] sm:$0xff] %vm1007, %v992
      %1013 = vst.msk [vmem:[#allocation2 + $0x28] sm:$0xff] %vm1007, %v994
      %1014 = vst.msk [vmem:[#allocation2 + $0x30] sm:$0xff] %vm1007, %v996
      %1015 = vst.msk [vmem:[#allocation2 + $0x38] sm:$0xff] %vm1007, %v998
      %s1016 = scalar_lea.vmem %s192, 324
      %v1017 = vld [vmem:[%s1016] sm:$0xf]
      %v1018 = vld [vmem:[%s1016 + $0x4] sm:$0xf]
      %v1019 = vld [vmem:[%s1016 + $0xc] sm:$0xf]
      %v1020 = vld [vmem:[%s1016 + $0x10] sm:$0xf]
      %v1021 = vld [vmem:[%s1016 + $0x18] sm:$0xf]
      %v1022 = vld [vmem:[%s1016 + $0x1c] sm:$0xf]
      %v1023 = vld [vmem:[%s1016 + $0x24] sm:$0xf]
      %v1024 = vld [vmem:[%s1016 + $0x28] sm:$0xf]
      %v1025 = vld [vmem:[%s1016 + $0x30] sm:$0xf]
      %v1026 = vld [vmem:[%s1016 + $0x34] sm:$0xf]
      %v1027 = vld [vmem:[%s1016 + $0x3c] sm:$0xf]
      %v1028 = vld [vmem:[%s1016 + $0x40] sm:$0xf]
      %v1029 = vld [vmem:[%s1016 + $0x48] sm:$0xf]
      %v1030 = vld [vmem:[%s1016 + $0x4c] sm:$0xf]
      %v1031 = vld [vmem:[%s1016 + $0x54] sm:$0xf]
      %v1032 = vld [vmem:[%s1016 + $0x58] sm:$0xf]
      %v1049 = vunpack.c.l.b16 %v1017
      %v1050 = vunpack.c.l.b16 %v1018
      %v1051 = vunpack.c.l.b16 %v1019
      %v1052 = vunpack.c.l.b16 %v1020
      %v1053 = vunpack.c.l.b16 %v1021
      %v1054 = vunpack.c.l.b16 %v1022
      %v1055 = vunpack.c.l.b16 %v1023
      %v1056 = vunpack.c.l.b16 %v1024
      %v1057 = vunpack.c.l.b16 %v1025
      %v1058 = vunpack.c.l.b16 %v1026
      %v1059 = vunpack.c.l.b16 %v1027
      %v1060 = vunpack.c.l.b16 %v1028
      %v1061 = vunpack.c.l.b16 %v1029
      %v1062 = vunpack.c.l.b16 %v1030
      %v1063 = vunpack.c.l.b16 %v1031
      %v1064 = vunpack.c.l.b16 %v1032
      %v1065 = vpack.c.b16 %v1050, %v1049
      %v1066 = vpack.c.b16 %v1052, %v1051
      %v1067 = vpack.c.b16 %v1054, %v1053
      %v1068 = vpack.c.b16 %v1056, %v1055
      %v1069 = vpack.c.b16 %v1058, %v1057
      %v1070 = vpack.c.b16 %v1060, %v1059
      %v1071 = vpack.c.b16 %v1062, %v1061
      %v1072 = vpack.c.b16 %v1064, %v1063
      %1073 = vrot.lane.b32.xlu0 %v1065, 20
      %v1074 = vpop.permute.xlu0 %1073
      %1075 = vrot.lane.b32.xlu0 %v1066, 20
      %v1076 = vpop.permute.xlu0 %1075
      %1077 = vrot.lane.b32.xlu0 %v1067, 20
      %v1078 = vpop.permute.xlu0 %1077
      %1079 = vrot.lane.b32.xlu0 %v1068, 20
      %v1080 = vpop.permute.xlu0 %1079
      %1081 = vrot.lane.b32.xlu0 %v1069, 20
      %v1082 = vpop.permute.xlu0 %1081
      %1083 = vrot.lane.b32.xlu0 %v1070, 20
      %v1084 = vpop.permute.xlu0 %1083
      %1085 = vrot.lane.b32.xlu0 %v1071, 20
      %v1086 = vpop.permute.xlu0 %1085
      %1087 = vrot.lane.b32.xlu0 %v1072, 20
      %v1088 = vpop.permute.xlu0 %1087
      %vm1097 = vcmask 195744
      %1098 = vst.msk [vmem:[#allocation2] sm:$0xff] %vm1097, %v1074
      %1099 = vst.msk [vmem:[#allocation2 + $0x8] sm:$0xff] %vm1097, %v1076
      %1100 = vst.msk [vmem:[#allocation2 + $0x10] sm:$0xff] %vm1097, %v1078
      %1101 = vst.msk [vmem:[#allocation2 + $0x18] sm:$0xff] %vm1097, %v1080
      %1102 = vst.msk [vmem:[#allocation2 + $0x20] sm:$0xff] %vm1097, %v1082
      %1103 = vst.msk [vmem:[#allocation2 + $0x28] sm:$0xff] %vm1097, %v1084
      %1104 = vst.msk [vmem:[#allocation2 + $0x30] sm:$0xff] %vm1097, %v1086
      %1105 = vst.msk [vmem:[#allocation2 + $0x38] sm:$0xff] %vm1097, %v1088
      %v1106 = vld [vmem:[%s926] sm:$0xf]
      %v1107 = vld [vmem:[%s926 + $0x4] sm:$0xf]
      %v1108 = vld [vmem:[%s926 + $0x8] sm:$0x1]
      %v1109 = vld [vmem:[%s926 + $0xc] sm:$0xf]
      %v1110 = vld [vmem:[%s926 + $0x10] sm:$0xf]
      %v1111 = vld [vmem:[%s926 + $0x14] sm:$0x1]
      %v1112 = vld [vmem:[%s926 + $0x18] sm:$0xf]
      %v1113 = vld [vmem:[%s926 + $0x1c] sm:$0xf]
      %v1114 = vld [vmem:[%s926 + $0x20] sm:$0x1]
      %v1115 = vld [vmem:[%s926 + $0x24] sm:$0xf]
      %v1116 = vld [vmem:[%s926 + $0x28] sm:$0xf]
      %v1117 = vld [vmem:[%s926 + $0x2c] sm:$0x1]
      %v1118 = vld [vmem:[%s926 + $0x30] sm:$0xf]
      %v1119 = vld [vmem:[%s926 + $0x34] sm:$0xf]
      %v1120 = vld [vmem:[%s926 + $0x38] sm:$0x1]
      %v1121 = vld [vmem:[%s926 + $0x3c] sm:$0xf]
      %v1122 = vld [vmem:[%s926 + $0x40] sm:$0xf]
      %v1123 = vld [vmem:[%s926 + $0x44] sm:$0x1]
      %v1124 = vld [vmem:[%s926 + $0x48] sm:$0xf]
      %v1125 = vld [vmem:[%s926 + $0x4c] sm:$0xf]
      %v1126 = vld [vmem:[%s926 + $0x50] sm:$0x1]
      %v1127 = vld [vmem:[%s926 + $0x54] sm:$0xf]
      %v1128 = vld [vmem:[%s926 + $0x58] sm:$0xf]
      %v1129 = vld [vmem:[%s926 + $0x5c] sm:$0x1]
      %v1131 = vshrl.u32 %v1106, 16
      %v1133 = vrot.slane %v1131, 4
      %v1134 = vshll.u32 %v1106, 16
      %v1136 = vrot.slane %v1134, 5
      %v1137 = vor.u32 %v1133, %v1136
      %v1138 = vrot.slane %v1137, 4
      %v1140 = vshll.u32 %v1107, 16
      %v1142 = vrot.slane %v1140, 5
      %v1143 = vsel %vm403, %v1138, %v1142
      %v1144 = vshrl.u32 %v1107, 16
      %v1146 = vrot.slane %v1144, 4
      %v1147 = vor.u32 %v1146, %v1142
      %v1148 = vrot.slane %v1147, 4
      %v1150 = vshll.u32 %v1108, 16
      %v1152 = vrot.slane %v1150, 5
      %v1153 = vsel %vm403, %v1148, %v1152
      %v1155 = vshrl.u32 %v1109, 16
      %v1157 = vrot.slane %v1155, 4
      %v1158 = vshll.u32 %v1109, 16
      %v1160 = vrot.slane %v1158, 5
      %v1161 = vor.u32 %v1157, %v1160
      %v1162 = vrot.slane %v1161, 4
      %v1164 = vshll.u32 %v1110, 16
      %v1166 = vrot.slane %v1164, 5
      %v1167 = vsel %vm403, %v1162, %v1166
      %v1168 = vshrl.u32 %v1110, 16
      %v1170 = vrot.slane %v1168, 4
      %v1171 = vor.u32 %v1170, %v1166
      %v1172 = vrot.slane %v1171, 4
      %v1174 = vshll.u32 %v1111, 16
      %v1176 = vrot.slane %v1174, 5
      %v1177 = vsel %vm403, %v1172, %v1176
      %v1179 = vshrl.u32 %v1112, 16
      %v1181 = vrot.slane %v1179, 4
      %v1182 = vshll.u32 %v1112, 16
      %v1184 = vrot.slane %v1182, 5
      %v1185 = vor.u32 %v1181, %v1184
      %v1186 = vrot.slane %v1185, 4
      %v1188 = vshll.u32 %v1113, 16
      %v1190 = vrot.slane %v1188, 5
      %v1191 = vsel %vm403, %v1186, %v1190
      %v1192 = vshrl.u32 %v1113, 16
      %v1194 = vrot.slane %v1192, 4
      %v1195 = vor.u32 %v1194, %v1190
      %v1196 = vrot.slane %v1195, 4
      %v1198 = vshll.u32 %v1114, 16
      %v1200 = vrot.slane %v1198, 5
      %v1201 = vsel %vm403, %v1196, %v1200
      %v1203 = vshrl.u32 %v1115, 16
      %v1205 = vrot.slane %v1203, 4
      %v1206 = vshll.u32 %v1115, 16
      %v1208 = vrot.slane %v1206, 5
      %v1209 = vor.u32 %v1205, %v1208
      %v1210 = vrot.slane %v1209, 4
      %v1212 = vshll.u32 %v1116, 16
      %v1214 = vrot.slane %v1212, 5
      %v1215 = vsel %vm403, %v1210, %v1214
      %v1216 = vshrl.u32 %v1116, 16
      %v1218 = vrot.slane %v1216, 4
      %v1219 = vor.u32 %v1218, %v1214
      %v1220 = vrot.slane %v1219, 4
      %v1222 = vshll.u32 %v1117, 16
      %v1224 = vrot.slane %v1222, 5
      %v1225 = vsel %vm403, %v1220, %v1224
      %v1227 = vshrl.u32 %v1118, 16
      %v1229 = vrot.slane %v1227, 4
      %v1230 = vshll.u32 %v1118, 16
      %v1232 = vrot.slane %v1230, 5
      %v1233 = vor.u32 %v1229, %v1232
      %v1234 = vrot.slane %v1233, 4
      %v1236 = vshll.u32 %v1119, 16
      %v1238 = vrot.slane %v1236, 5
      %v1239 = vsel %vm403, %v1234, %v1238
      %v1240 = vshrl.u32 %v1119, 16
      %v1242 = vrot.slane %v1240, 4
      %v1243 = vor.u32 %v1242, %v1238
      %v1244 = vrot.slane %v1243, 4
      %v1246 = vshll.u32 %v1120, 16
      %v1248 = vrot.slane %v1246, 5
      %v1249 = vsel %vm403, %v1244, %v1248
      %v1251 = vshrl.u32 %v1121, 16
      %v1253 = vrot.slane %v1251, 4
      %v1254 = vshll.u32 %v1121, 16
      %v1256 = vrot.slane %v1254, 5
      %v1257 = vor.u32 %v1253, %v1256
      %v1258 = vrot.slane %v1257, 4
      %v1260 = vshll.u32 %v1122, 16
      %v1262 = vrot.slane %v1260, 5
      %v1263 = vsel %vm403, %v1258, %v1262
      %v1264 = vshrl.u32 %v1122, 16
      %v1266 = vrot.slane %v1264, 4
      %v1267 = vor.u32 %v1266, %v1262
      %v1268 = vrot.slane %v1267, 4
      %v1270 = vshll.u32 %v1123, 16
      %v1272 = vrot.slane %v1270, 5
      %v1273 = vsel %vm403, %v1268, %v1272
      %v1275 = vshrl.u32 %v1124, 16
      %v1277 = vrot.slane %v1275, 4
      %v1278 = vshll.u32 %v1124, 16
      %v1280 = vrot.slane %v1278, 5
      %v1281 = vor.u32 %v1277, %v1280
      %v1282 = vrot.slane %v1281, 4
      %v1284 = vshll.u32 %v1125, 16
      %v1286 = vrot.slane %v1284, 5
      %v1287 = vsel %vm403, %v1282, %v1286
      %v1288 = vshrl.u32 %v1125, 16
      %v1290 = vrot.slane %v1288, 4
      %v1291 = vor.u32 %v1290, %v1286
      %v1292 = vrot.slane %v1291, 4
      %v1294 = vshll.u32 %v1126, 16
      %v1296 = vrot.slane %v1294, 5
      %v1297 = vsel %vm403, %v1292, %v1296
      %v1299 = vshrl.u32 %v1127, 16
      %v1301 = vrot.slane %v1299, 4
      %v1302 = vshll.u32 %v1127, 16
      %v1304 = vrot.slane %v1302, 5
      %v1305 = vor.u32 %v1301, %v1304
      %v1306 = vrot.slane %v1305, 4
      %v1308 = vshll.u32 %v1128, 16
      %v1310 = vrot.slane %v1308, 5
      %v1311 = vsel %vm403, %v1306, %v1310
      %v1312 = vshrl.u32 %v1128, 16
      %v1314 = vrot.slane %v1312, 4
      %v1315 = vor.u32 %v1314, %v1310
      %v1316 = vrot.slane %v1315, 4
      %v1318 = vshll.u32 %v1129, 16
      %v1320 = vrot.slane %v1318, 5
      %v1321 = vsel %vm403, %v1316, %v1320
      %v1322 = vunpack.c.l.b16 %v1143
      %v1323 = vunpack.c.l.b16 %v1153
      %v1324 = vunpack.c.l.b16 %v1167
      %v1325 = vunpack.c.l.b16 %v1177
      %v1326 = vunpack.c.l.b16 %v1191
      %v1327 = vunpack.c.l.b16 %v1201
      %v1328 = vunpack.c.l.b16 %v1215
      %v1329 = vunpack.c.l.b16 %v1225
      %v1330 = vunpack.c.l.b16 %v1239
      %v1331 = vunpack.c.l.b16 %v1249
      %v1332 = vunpack.c.l.b16 %v1263
      %v1333 = vunpack.c.l.b16 %v1273
      %v1334 = vunpack.c.l.b16 %v1287
      %v1335 = vunpack.c.l.b16 %v1297
      %v1336 = vunpack.c.l.b16 %v1311
      %v1337 = vunpack.c.l.b16 %v1321
      %v1338 = vpack.c.b16 %v1323, %v1322
      %v1339 = vpack.c.b16 %v1325, %v1324
      %v1340 = vpack.c.b16 %v1327, %v1326
      %v1341 = vpack.c.b16 %v1329, %v1328
      %v1342 = vpack.c.b16 %v1331, %v1330
      %v1343 = vpack.c.b16 %v1333, %v1332
      %v1344 = vpack.c.b16 %v1335, %v1334
      %v1345 = vpack.c.b16 %v1337, %v1336
      %1346 = vrot.lane.b32.xlu0 %v1338, 24
      %v1347 = vpop.permute.xlu0 %1346
      %1348 = vrot.lane.b32.xlu0 %v1339, 24
      %v1349 = vpop.permute.xlu0 %1348
      %1350 = vrot.lane.b32.xlu0 %v1340, 24
      %v1351 = vpop.permute.xlu0 %1350
      %1352 = vrot.lane.b32.xlu0 %v1341, 24
      %v1353 = vpop.permute.xlu0 %1352
      %1354 = vrot.lane.b32.xlu0 %v1342, 24
      %v1355 = vpop.permute.xlu0 %1354
      %1356 = vrot.lane.b32.xlu0 %v1343, 24
      %v1357 = vpop.permute.xlu0 %1356
      %1358 = vrot.lane.b32.xlu0 %v1344, 24
      %v1359 = vpop.permute.xlu0 %1358
      %1360 = vrot.lane.b32.xlu0 %v1345, 24
      %v1361 = vpop.permute.xlu0 %1360
      %vm1370 = vcmask 228544
      %1371 = vst.msk [vmem:[#allocation2] sm:$0xff] %vm1370, %v1347
      %1372 = vst.msk [vmem:[#allocation2 + $0x8] sm:$0xff] %vm1370, %v1349
      %1373 = vst.msk [vmem:[#allocation2 + $0x10] sm:$0xff] %vm1370, %v1351
      %1374 = vst.msk [vmem:[#allocation2 + $0x18] sm:$0xff] %vm1370, %v1353
      %1375 = vst.msk [vmem:[#allocation2 + $0x20] sm:$0xff] %vm1370, %v1355
      %1376 = vst.msk [vmem:[#allocation2 + $0x28] sm:$0xff] %vm1370, %v1357
      %1377 = vst.msk [vmem:[#allocation2 + $0x30] sm:$0xff] %vm1370, %v1359
      %1378 = vst.msk [vmem:[#allocation2 + $0x38] sm:$0xff] %vm1370, %v1361
      %v1379 = vld [vmem:[%s1016] sm:$0xf]
      %v1380 = vld [vmem:[%s1016 + $0x4] sm:$0xf]
      %v1381 = vld [vmem:[%s1016 + $0x8] sm:$0x1]
      %v1382 = vld [vmem:[%s1016 + $0xc] sm:$0xf]
      %v1383 = vld [vmem:[%s1016 + $0x10] sm:$0xf]
      %v1384 = vld [vmem:[%s1016 + $0x14] sm:$0x1]
      %v1385 = vld [vmem:[%s1016 + $0x18] sm:$0xf]
      %v1386 = vld [vmem:[%s1016 + $0x1c] sm:$0xf]
      %v1387 = vld [vmem:[%s1016 + $0x20] sm:$0x1]
      %v1388 = vld [vmem:[%s1016 + $0x24] sm:$0xf]
      %v1389 = vld [vmem:[%s1016 + $0x28] sm:$0xf]
      %v1390 = vld [vmem:[%s1016 + $0x2c] sm:$0x1]
      %v1391 = vld [vmem:[%s1016 + $0x30] sm:$0xf]
      %v1392 = vld [vmem:[%s1016 + $0x34] sm:$0xf]
      %v1393 = vld [vmem:[%s1016 + $0x38] sm:$0x1]
      %v1394 = vld [vmem:[%s1016 + $0x3c] sm:$0xf]
      %v1395 = vld [vmem:[%s1016 + $0x40] sm:$0xf]
      %v1396 = vld [vmem:[%s1016 + $0x44] sm:$0x1]
      %v1397 = vld [vmem:[%s1016 + $0x48] sm:$0xf]
      %v1398 = vld [vmem:[%s1016 + $0x4c] sm:$0xf]
      %v1399 = vld [vmem:[%s1016 + $0x50] sm:$0x1]
      %v1400 = vld [vmem:[%s1016 + $0x54] sm:$0xf]
      %v1401 = vld [vmem:[%s1016 + $0x58] sm:$0xf]
      %v1402 = vld [vmem:[%s1016 + $0x5c] sm:$0x1]
      %v1404 = vshrl.u32 %v1379, 16
      %v1406 = vrot.slane %v1404, 4
      %v1407 = vshll.u32 %v1379, 16
      %v1409 = vrot.slane %v1407, 5
      %v1410 = vor.u32 %v1406, %v1409
      %v1411 = vrot.slane %v1410, 4
      %v1413 = vshll.u32 %v1380, 16
      %v1415 = vrot.slane %v1413, 5
      %v1416 = vsel %vm403, %v1411, %v1415
      %v1417 = vshrl.u32 %v1380, 16
      %v1419 = vrot.slane %v1417, 4
      %v1420 = vor.u32 %v1419, %v1415
      %v1421 = vrot.slane %v1420, 4
      %v1423 = vshll.u32 %v1381, 16
      %v1425 = vrot.slane %v1423, 5
      %v1426 = vsel %vm403, %v1421, %v1425
      %v1428 = vshrl.u32 %v1382, 16
      %v1430 = vrot.slane %v1428, 4
      %v1431 = vshll.u32 %v1382, 16
      %v1433 = vrot.slane %v1431, 5
      %v1434 = vor.u32 %v1430, %v1433
      %v1435 = vrot.slane %v1434, 4
      %v1437 = vshll.u32 %v1383, 16
      %v1439 = vrot.slane %v1437, 5
      %v1440 = vsel %vm403, %v1435, %v1439
      %v1441 = vshrl.u32 %v1383, 16
      %v1443 = vrot.slane %v1441, 4
      %v1444 = vor.u32 %v1443, %v1439
      %v1445 = vrot.slane %v1444, 4
      %v1447 = vshll.u32 %v1384, 16
      %v1449 = vrot.slane %v1447, 5
      %v1450 = vsel %vm403, %v1445, %v1449
      %v1452 = vshrl.u32 %v1385, 16
      %v1454 = vrot.slane %v1452, 4
      %v1455 = vshll.u32 %v1385, 16
      %v1457 = vrot.slane %v1455, 5
      %v1458 = vor.u32 %v1454, %v1457
      %v1459 = vrot.slane %v1458, 4
      %v1461 = vshll.u32 %v1386, 16
      %v1463 = vrot.slane %v1461, 5
      %v1464 = vsel %vm403, %v1459, %v1463
      %v1465 = vshrl.u32 %v1386, 16
      %v1467 = vrot.slane %v1465, 4
      %v1468 = vor.u32 %v1467, %v1463
      %v1469 = vrot.slane %v1468, 4
      %v1471 = vshll.u32 %v1387, 16
      %v1473 = vrot.slane %v1471, 5
      %v1474 = vsel %vm403, %v1469, %v1473
      %v1476 = vshrl.u32 %v1388, 16
      %v1478 = vrot.slane %v1476, 4
      %v1479 = vshll.u32 %v1388, 16
      %v1481 = vrot.slane %v1479, 5
      %v1482 = vor.u32 %v1478, %v1481
      %v1483 = vrot.slane %v1482, 4
      %v1485 = vshll.u32 %v1389, 16
      %v1487 = vrot.slane %v1485, 5
      %v1488 = vsel %vm403, %v1483, %v1487
      %v1489 = vshrl.u32 %v1389, 16
      %v1491 = vrot.slane %v1489, 4
      %v1492 = vor.u32 %v1491, %v1487
      %v1493 = vrot.slane %v1492, 4
      %v1495 = vshll.u32 %v1390, 16
      %v1497 = vrot.slane %v1495, 5
      %v1498 = vsel %vm403, %v1493, %v1497
      %v1500 = vshrl.u32 %v1391, 16
      %v1502 = vrot.slane %v1500, 4
      %v1503 = vshll.u32 %v1391, 16
      %v1505 = vrot.slane %v1503, 5
      %v1506 = vor.u32 %v1502, %v1505
      %v1507 = vrot.slane %v1506, 4
      %v1509 = vshll.u32 %v1392, 16
      %v1511 = vrot.slane %v1509, 5
      %v1512 = vsel %vm403, %v1507, %v1511
      %v1513 = vshrl.u32 %v1392, 16
      %v1515 = vrot.slane %v1513, 4
      %v1516 = vor.u32 %v1515, %v1511
      %v1517 = vrot.slane %v1516, 4
      %v1519 = vshll.u32 %v1393, 16
      %v1521 = vrot.slane %v1519, 5
      %v1522 = vsel %vm403, %v1517, %v1521
      %v1524 = vshrl.u32 %v1394, 16
      %v1526 = vrot.slane %v1524, 4
      %v1527 = vshll.u32 %v1394, 16
      %v1529 = vrot.slane %v1527, 5
      %v1530 = vor.u32 %v1526, %v1529
      %v1531 = vrot.slane %v1530, 4
      %v1533 = vshll.u32 %v1395, 16
      %v1535 = vrot.slane %v1533, 5
      %v1536 = vsel %vm403, %v1531, %v1535
      %v1537 = vshrl.u32 %v1395, 16
      %v1539 = vrot.slane %v1537, 4
      %v1540 = vor.u32 %v1539, %v1535
      %v1541 = vrot.slane %v1540, 4
      %v1543 = vshll.u32 %v1396, 16
      %v1545 = vrot.slane %v1543, 5
      %v1546 = vsel %vm403, %v1541, %v1545
      %v1548 = vshrl.u32 %v1397, 16
      %v1550 = vrot.slane %v1548, 4
      %v1551 = vshll.u32 %v1397, 16
      %v1553 = vrot.slane %v1551, 5
      %v1554 = vor.u32 %v1550, %v1553
      %v1555 = vrot.slane %v1554, 4
      %v1557 = vshll.u32 %v1398, 16
      %v1559 = vrot.slane %v1557, 5
      %v1560 = vsel %vm403, %v1555, %v1559
      %v1561 = vshrl.u32 %v1398, 16
      %v1563 = vrot.slane %v1561, 4
      %v1564 = vor.u32 %v1563, %v1559
      %v1565 = vrot.slane %v1564, 4
      %v1567 = vshll.u32 %v1399, 16
      %v1569 = vrot.slane %v1567, 5
      %v1570 = vsel %vm403, %v1565, %v1569
      %v1572 = vshrl.u32 %v1400, 16
      %v1574 = vrot.slane %v1572, 4
      %v1575 = vshll.u32 %v1400, 16
      %v1577 = vrot.slane %v1575, 5
      %v1578 = vor.u32 %v1574, %v1577
      %v1579 = vrot.slane %v1578, 4
      %v1581 = vshll.u32 %v1401, 16
      %v1583 = vrot.slane %v1581, 5
      %v1584 = vsel %vm403, %v1579, %v1583
      %v1585 = vshrl.u32 %v1401, 16
      %v1587 = vrot.slane %v1585, 4
      %v1588 = vor.u32 %v1587, %v1583
      %v1589 = vrot.slane %v1588, 4
      %v1591 = vshll.u32 %v1402, 16
      %v1593 = vrot.slane %v1591, 5
      %v1594 = vsel %vm403, %v1589, %v1593
      %v1595 = vunpack.c.l.b16 %v1416
      %v1596 = vunpack.c.l.b16 %v1426
      %v1597 = vunpack.c.l.b16 %v1440
      %v1598 = vunpack.c.l.b16 %v1450
      %v1599 = vunpack.c.l.b16 %v1464
      %v1600 = vunpack.c.l.b16 %v1474
      %v1601 = vunpack.c.l.b16 %v1488
      %v1602 = vunpack.c.l.b16 %v1498
      %v1603 = vunpack.c.l.b16 %v1512
      %v1604 = vunpack.c.l.b16 %v1522
      %v1605 = vunpack.c.l.b16 %v1536
      %v1606 = vunpack.c.l.b16 %v1546
      %v1607 = vunpack.c.l.b16 %v1560
      %v1608 = vunpack.c.l.b16 %v1570
      %v1609 = vunpack.c.l.b16 %v1584
      %v1610 = vunpack.c.l.b16 %v1594
      %v1611 = vpack.c.b16 %v1596, %v1595
      %v1612 = vpack.c.b16 %v1598, %v1597
      %v1613 = vpack.c.b16 %v1600, %v1599
      %v1614 = vpack.c.b16 %v1602, %v1601
      %v1615 = vpack.c.b16 %v1604, %v1603
      %v1616 = vpack.c.b16 %v1606, %v1605
      %v1617 = vpack.c.b16 %v1608, %v1607
      %v1618 = vpack.c.b16 %v1610, %v1609
      %1619 = vrot.lane.b32.xlu0 %v1611, 28
      %v1620 = vpop.permute.xlu0 %1619
      %1621 = vrot.lane.b32.xlu0 %v1612, 28
      %v1622 = vpop.permute.xlu0 %1621
      %1623 = vrot.lane.b32.xlu0 %v1613, 28
      %v1624 = vpop.permute.xlu0 %1623
      %1625 = vrot.lane.b32.xlu0 %v1614, 28
      %v1626 = vpop.permute.xlu0 %1625
      %1627 = vrot.lane.b32.xlu0 %v1615, 28
      %v1628 = vpop.permute.xlu0 %1627
      %1629 = vrot.lane.b32.xlu0 %v1616, 28
      %v1630 = vpop.permute.xlu0 %1629
      %1631 = vrot.lane.b32.xlu0 %v1617, 28
      %v1632 = vpop.permute.xlu0 %1631
      %1633 = vrot.lane.b32.xlu0 %v1618, 28
      %v1634 = vpop.permute.xlu0 %1633
      %vm1643 = vcmask 261344
      %1644 = vst.msk [vmem:[#allocation2] sm:$0xff] %vm1643, %v1620
      %1645 = vst.msk [vmem:[#allocation2 + $0x8] sm:$0xff] %vm1643, %v1622
      %1646 = vst.msk [vmem:[#allocation2 + $0x10] sm:$0xff] %vm1643, %v1624
      %1647 = vst.msk [vmem:[#allocation2 + $0x18] sm:$0xff] %vm1643, %v1626
      %1648 = vst.msk [vmem:[#allocation2 + $0x20] sm:$0xff] %vm1643, %v1628
      %1649 = vst.msk [vmem:[#allocation2 + $0x28] sm:$0xff] %vm1643, %v1630
      %1650 = vst.msk [vmem:[#allocation2 + $0x30] sm:$0xff] %vm1643, %v1632
      %1651 = vst.msk [vmem:[#allocation2 + $0x38] sm:$0xff] %vm1643, %v1634
      %s1652 = scalar_lea.vmem %s192, 12
      %v1653 = vld [vmem:[%s1652] sm:$0xf]
      %v1654 = vld [vmem:[%s1652 + $0x4] sm:$0xf]
      %v1655 = vld [vmem:[%s1652 + $0xc] sm:$0xf]
      %v1656 = vld [vmem:[%s1652 + $0x10] sm:$0xf]
      %v1657 = vld [vmem:[%s1652 + $0x18] sm:$0xf]
      %v1658 = vld [vmem:[%s1652 + $0x1c] sm:$0xf]
      %v1659 = vld [vmem:[%s1652 + $0x24] sm:$0xf]
      %v1660 = vld [vmem:[%s1652 + $0x28] sm:$0xf]
      %v1661 = vld [vmem:[%s1652 + $0x30] sm:$0xf]
      %v1662 = vld [vmem:[%s1652 + $0x34] sm:$0xf]
      %v1663 = vld [vmem:[%s1652 + $0x3c] sm:$0xf]
      %v1664 = vld [vmem:[%s1652 + $0x40] sm:$0xf]
      %v1665 = vld [vmem:[%s1652 + $0x48] sm:$0xf]
      %v1666 = vld [vmem:[%s1652 + $0x4c] sm:$0xf]
      %v1667 = vld [vmem:[%s1652 + $0x54] sm:$0xf]
      %v1668 = vld [vmem:[%s1652 + $0x58] sm:$0xf]
      %v1685 = vunpack.c.l.b16 %v1653
      %v1686 = vunpack.c.l.b16 %v1654
      %v1687 = vunpack.c.l.b16 %v1655
      %v1688 = vunpack.c.l.b16 %v1656
      %v1689 = vunpack.c.l.b16 %v1657
      %v1690 = vunpack.c.l.b16 %v1658
      %v1691 = vunpack.c.l.b16 %v1659
      %v1692 = vunpack.c.l.b16 %v1660
      %v1693 = vunpack.c.l.b16 %v1661
      %v1694 = vunpack.c.l.b16 %v1662
      %v1695 = vunpack.c.l.b16 %v1663
      %v1696 = vunpack.c.l.b16 %v1664
      %v1697 = vunpack.c.l.b16 %v1665
      %v1698 = vunpack.c.l.b16 %v1666
      %v1699 = vunpack.c.l.b16 %v1667
      %v1700 = vunpack.c.l.b16 %v1668
      %v1701 = vpack.c.b16 %v1686, %v1685
      %v1702 = vpack.c.b16 %v1688, %v1687
      %v1703 = vpack.c.b16 %v1690, %v1689
      %v1704 = vpack.c.b16 %v1692, %v1691
      %v1705 = vpack.c.b16 %v1694, %v1693
      %v1706 = vpack.c.b16 %v1696, %v1695
      %v1707 = vpack.c.b16 %v1698, %v1697
      %v1708 = vpack.c.b16 %v1700, %v1699
      %1709 = vrot.lane.b32.xlu0 %v1701, 32
      %v1710 = vpop.permute.xlu0 %1709
      %1711 = vrot.lane.b32.xlu0 %v1702, 32
      %v1712 = vpop.permute.xlu0 %1711
      %1713 = vrot.lane.b32.xlu0 %v1703, 32
      %v1714 = vpop.permute.xlu0 %1713
      %1715 = vrot.lane.b32.xlu0 %v1704, 32
      %v1716 = vpop.permute.xlu0 %1715
      %1717 = vrot.lane.b32.xlu0 %v1705, 32
      %v1718 = vpop.permute.xlu0 %1717
      %1719 = vrot.lane.b32.xlu0 %v1706, 32
      %v1720 = vpop.permute.xlu0 %1719
      %1721 = vrot.lane.b32.xlu0 %v1707, 32
      %v1722 = vpop.permute.xlu0 %1721
      %1723 = vrot.lane.b32.xlu0 %v1708, 32
      %v1724 = vpop.permute.xlu0 %1723
      %vm1733 = vcmask 294144
      %1734 = vst.msk [vmem:[#allocation2] sm:$0xff] %vm1733, %v1710
      %1735 = vst.msk [vmem:[#allocation2 + $0x8] sm:$0xff] %vm1733, %v1712
      %1736 = vst.msk [vmem:[#allocation2 + $0x10] sm:$0xff] %vm1733, %v1714
      %1737 = vst.msk [vmem:[#allocation2 + $0x18] sm:$0xff] %vm1733, %v1716
      %1738 = vst.msk [vmem:[#allocation2 + $0x20] sm:$0xff] %vm1733, %v1718
      %1739 = vst.msk [vmem:[#allocation2 + $0x28] sm:$0xff] %vm1733, %v1720
      %1740 = vst.msk [vmem:[#allocation2 + $0x30] sm:$0xff] %vm1733, %v1722
      %1741 = vst.msk [vmem:[#allocation2 + $0x38] sm:$0xff] %vm1733, %v1724
      %s1742 = scalar_lea.vmem %s192, 120
      %v1743 = vld [vmem:[%s1742] sm:$0xf]
      %v1744 = vld [vmem:[%s1742 + $0x4] sm:$0xf]
      %v1745 = vld [vmem:[%s1742 + $0xc] sm:$0xf]
      %v1746 = vld [vmem:[%s1742 + $0x10] sm:$0xf]
      %v1747 = vld [vmem:[%s1742 + $0x18] sm:$0xf]
      %v1748 = vld [vmem:[%s1742 + $0x1c] sm:$0xf]
      %v1749 = vld [vmem:[%s1742 + $0x24] sm:$0xf]
      %v1750 = vld [vmem:[%s1742 + $0x28] sm:$0xf]
      %v1751 = vld [vmem:[%s1742 + $0x30] sm:$0xf]
      %v1752 = vld [vmem:[%s1742 + $0x34] sm:$0xf]
      %v1753 = vld [vmem:[%s1742 + $0x3c] sm:$0xf]
      %v1754 = vld [vmem:[%s1742 + $0x40] sm:$0xf]
      %v1755 = vld [vmem:[%s1742 + $0x48] sm:$0xf]
      %v1756 = vld [vmem:[%s1742 + $0x4c] sm:$0xf]
      %v1757 = vld [vmem:[%s1742 + $0x54] sm:$0xf]
      %v1758 = vld [vmem:[%s1742 + $0x58] sm:$0xf]
      %v1775 = vunpack.c.l.b16 %v1743
      %v1776 = vunpack.c.l.b16 %v1744
      %v1777 = vunpack.c.l.b16 %v1745
      %v1778 = vunpack.c.l.b16 %v1746
      %v1779 = vunpack.c.l.b16 %v1747
      %v1780 = vunpack.c.l.b16 %v1748
      %v1781 = vunpack.c.l.b16 %v1749
      %v1782 = vunpack.c.l.b16 %v1750
      %v1783 = vunpack.c.l.b16 %v1751
      %v1784 = vunpack.c.l.b16 %v1752
      %v1785 = vunpack.c.l.b16 %v1753
      %v1786 = vunpack.c.l.b16 %v1754
      %v1787 = vunpack.c.l.b16 %v1755
      %v1788 = vunpack.c.l.b16 %v1756
      %v1789 = vunpack.c.l.b16 %v1757
      %v1790 = vunpack.c.l.b16 %v1758
      %v1791 = vpack.c.b16 %v1776, %v1775
      %v1792 = vpack.c.b16 %v1778, %v1777
      %v1793 = vpack.c.b16 %v1780, %v1779
      %v1794 = vpack.c.b16 %v1782, %v1781
      %v1795 = vpack.c.b16 %v1784, %v1783
      %v1796 = vpack.c.b16 %v1786, %v1785
      %v1797 = vpack.c.b16 %v1788, %v1787
      %v1798 = vpack.c.b16 %v1790, %v1789
      %1799 = vrot.lane.b32.xlu0 %v1791, 36
      %v1800 = vpop.permute.xlu0 %1799
      %1801 = vrot.lane.b32.xlu0 %v1792, 36
      %v1802 = vpop.permute.xlu0 %1801
      %1803 = vrot.lane.b32.xlu0 %v1793, 36
      %v1804 = vpop.permute.xlu0 %1803
      %1805 = vrot.lane.b32.xlu0 %v1794, 36
      %v1806 = vpop.permute.xlu0 %1805
      %1807 = vrot.lane.b32.xlu0 %v1795, 36
      %v1808 = vpop.permute.xlu0 %1807
      %1809 = vrot.lane.b32.xlu0 %v1796, 36
      %v1810 = vpop.permute.xlu0 %1809
      %1811 = vrot.lane.b32.xlu0 %v1797, 36
      %v1812 = vpop.permute.xlu0 %1811
      %1813 = vrot.lane.b32.xlu0 %v1798, 36
      %v1814 = vpop.permute.xlu0 %1813
      %vm1823 = vcmask 326944
      %1824 = vst.msk [vmem:[#allocation2] sm:$0xff] %vm1823, %v1800
      %1825 = vst.msk [vmem:[#allocation2 + $0x8] sm:$0xff] %vm1823, %v1802
      %1826 = vst.msk [vmem:[#allocation2 + $0x10] sm:$0xff] %vm1823, %v1804
      %1827 = vst.msk [vmem:[#allocation2 + $0x18] sm:$0xff] %vm1823, %v1806
      %1828 = vst.msk [vmem:[#allocation2 + $0x20] sm:$0xff] %vm1823, %v1808
      %1829 = vst.msk [vmem:[#allocation2 + $0x28] sm:$0xff] %vm1823, %v1810
      %1830 = vst.msk [vmem:[#allocation2 + $0x30] sm:$0xff] %vm1823, %v1812
      %1831 = vst.msk [vmem:[#allocation2 + $0x38] sm:$0xff] %vm1823, %v1814
      %v1832 = vld [vmem:[%s1652] sm:$0xf]
      %v1833 = vld [vmem:[%s1652 + $0x4] sm:$0xf]
      %v1834 = vld [vmem:[%s1652 + $0x8] sm:$0x1]
      %v1835 = vld [vmem:[%s1652 + $0xc] sm:$0xf]
      %v1836 = vld [vmem:[%s1652 + $0x10] sm:$0xf]
      %v1837 = vld [vmem:[%s1652 + $0x14] sm:$0x1]
      %v1838 = vld [vmem:[%s1652 + $0x18] sm:$0xf]
      %v1839 = vld [vmem:[%s1652 + $0x1c] sm:$0xf]
      %v1840 = vld [vmem:[%s1652 + $0x20] sm:$0x1]
      %v1841 = vld [vmem:[%s1652 + $0x24] sm:$0xf]
      %v1842 = vld [vmem:[%s1652 + $0x28] sm:$0xf]
      %v1843 = vld [vmem:[%s1652 + $0x2c] sm:$0x1]
      %v1844 = vld [vmem:[%s1652 + $0x30] sm:$0xf]
      %v1845 = vld [vmem:[%s1652 + $0x34] sm:$0xf]
      %v1846 = vld [vmem:[%s1652 + $0x38] sm:$0x1]
      %v1847 = vld [vmem:[%s1652 + $0x3c] sm:$0xf]
      %v1848 = vld [vmem:[%s1652 + $0x40] sm:$0xf]
      %v1849 = vld [vmem:[%s1652 + $0x44] sm:$0x1]
      %v1850 = vld [vmem:[%s1652 + $0x48] sm:$0xf]
      %v1851 = vld [vmem:[%s1652 + $0x4c] sm:$0xf]
      %v1852 = vld [vmem:[%s1652 + $0x50] sm:$0x1]
      %v1853 = vld [vmem:[%s1652 + $0x54] sm:$0xf]
      %v1854 = vld [vmem:[%s1652 + $0x58] sm:$0xf]
      %v1855 = vld [vmem:[%s1652 + $0x5c] sm:$0x1]
      %v1857 = vshrl.u32 %v1832, 16
      %v1859 = vrot.slane %v1857, 4
      %v1860 = vshll.u32 %v1832, 16
      %v1862 = vrot.slane %v1860, 5
      %v1863 = vor.u32 %v1859, %v1862
      %v1864 = vrot.slane %v1863, 4
      %v1866 = vshll.u32 %v1833, 16
      %v1868 = vrot.slane %v1866, 5
      %v1869 = vsel %vm403, %v1864, %v1868
      %v1870 = vshrl.u32 %v1833, 16
      %v1872 = vrot.slane %v1870, 4
      %v1873 = vor.u32 %v1872, %v1868
      %v1874 = vrot.slane %v1873, 4
      %v1876 = vshll.u32 %v1834, 16
      %v1878 = vrot.slane %v1876, 5
      %v1879 = vsel %vm403, %v1874, %v1878
      %v1881 = vshrl.u32 %v1835, 16
      %v1883 = vrot.slane %v1881, 4
      %v1884 = vshll.u32 %v1835, 16
      %v1886 = vrot.slane %v1884, 5
      %v1887 = vor.u32 %v1883, %v1886
      %v1888 = vrot.slane %v1887, 4
      %v1890 = vshll.u32 %v1836, 16
      %v1892 = vrot.slane %v1890, 5
      %v1893 = vsel %vm403, %v1888, %v1892
      %v1894 = vshrl.u32 %v1836, 16
      %v1896 = vrot.slane %v1894, 4
      %v1897 = vor.u32 %v1896, %v1892
      %v1898 = vrot.slane %v1897, 4
      %v1900 = vshll.u32 %v1837, 16
      %v1902 = vrot.slane %v1900, 5
      %v1903 = vsel %vm403, %v1898, %v1902
      %v1905 = vshrl.u32 %v1838, 16
      %v1907 = vrot.slane %v1905, 4
      %v1908 = vshll.u32 %v1838, 16
      %v1910 = vrot.slane %v1908, 5
      %v1911 = vor.u32 %v1907, %v1910
      %v1912 = vrot.slane %v1911, 4
      %v1914 = vshll.u32 %v1839, 16
      %v1916 = vrot.slane %v1914, 5
      %v1917 = vsel %vm403, %v1912, %v1916
      %v1918 = vshrl.u32 %v1839, 16
      %v1920 = vrot.slane %v1918, 4
      %v1921 = vor.u32 %v1920, %v1916
      %v1922 = vrot.slane %v1921, 4
      %v1924 = vshll.u32 %v1840, 16
      %v1926 = vrot.slane %v1924, 5
      %v1927 = vsel %vm403, %v1922, %v1926
      %v1929 = vshrl.u32 %v1841, 16
      %v1931 = vrot.slane %v1929, 4
      %v1932 = vshll.u32 %v1841, 16
      %v1934 = vrot.slane %v1932, 5
      %v1935 = vor.u32 %v1931, %v1934
      %v1936 = vrot.slane %v1935, 4
      %v1938 = vshll.u32 %v1842, 16
      %v1940 = vrot.slane %v1938, 5
      %v1941 = vsel %vm403, %v1936, %v1940
      %v1942 = vshrl.u32 %v1842, 16
      %v1944 = vrot.slane %v1942, 4
      %v1945 = vor.u32 %v1944, %v1940
      %v1946 = vrot.slane %v1945, 4
      %v1948 = vshll.u32 %v1843, 16
      %v1950 = vrot.slane %v1948, 5
      %v1951 = vsel %vm403, %v1946, %v1950
      %v1953 = vshrl.u32 %v1844, 16
      %v1955 = vrot.slane %v1953, 4
      %v1956 = vshll.u32 %v1844, 16
      %v1958 = vrot.slane %v1956, 5
      %v1959 = vor.u32 %v1955, %v1958
      %v1960 = vrot.slane %v1959, 4
      %v1962 = vshll.u32 %v1845, 16
      %v1964 = vrot.slane %v1962, 5
      %v1965 = vsel %vm403, %v1960, %v1964
      %v1966 = vshrl.u32 %v1845, 16
      %v1968 = vrot.slane %v1966, 4
      %v1969 = vor.u32 %v1968, %v1964
      %v1970 = vrot.slane %v1969, 4
      %v1972 = vshll.u32 %v1846, 16
      %v1974 = vrot.slane %v1972, 5
      %v1975 = vsel %vm403, %v1970, %v1974
      %v1977 = vshrl.u32 %v1847, 16
      %v1979 = vrot.slane %v1977, 4
      %v1980 = vshll.u32 %v1847, 16
      %v1982 = vrot.slane %v1980, 5
      %v1983 = vor.u32 %v1979, %v1982
      %v1984 = vrot.slane %v1983, 4
      %v1986 = vshll.u32 %v1848, 16
      %v1988 = vrot.slane %v1986, 5
      %v1989 = vsel %vm403, %v1984, %v1988
      %v1990 = vshrl.u32 %v1848, 16
      %v1992 = vrot.slane %v1990, 4
      %v1993 = vor.u32 %v1992, %v1988
      %v1994 = vrot.slane %v1993, 4
      %v1996 = vshll.u32 %v1849, 16
      %v1998 = vrot.slane %v1996, 5
      %v1999 = vsel %vm403, %v1994, %v1998
      %v2001 = vshrl.u32 %v1850, 16
      %v2003 = vrot.slane %v2001, 4
      %v2004 = vshll.u32 %v1850, 16
      %v2006 = vrot.slane %v2004, 5
      %v2007 = vor.u32 %v2003, %v2006
      %v2008 = vrot.slane %v2007, 4
      %v2010 = vshll.u32 %v1851, 16
      %v2012 = vrot.slane %v2010, 5
      %v2013 = vsel %vm403, %v2008, %v2012
      %v2014 = vshrl.u32 %v1851, 16
      %v2016 = vrot.slane %v2014, 4
      %v2017 = vor.u32 %v2016, %v2012
      %v2018 = vrot.slane %v2017, 4
      %v2020 = vshll.u32 %v1852, 16
      %v2022 = vrot.slane %v2020, 5
      %v2023 = vsel %vm403, %v2018, %v2022
      %v2025 = vshrl.u32 %v1853, 16
      %v2027 = vrot.slane %v2025, 4
      %v2028 = vshll.u32 %v1853, 16
      %v2030 = vrot.slane %v2028, 5
      %v2031 = vor.u32 %v2027, %v2030
      %v2032 = vrot.slane %v2031, 4
      %v2034 = vshll.u32 %v1854, 16
      %v2036 = vrot.slane %v2034, 5
      %v2037 = vsel %vm403, %v2032, %v2036
      %v2038 = vshrl.u32 %v1854, 16
      %v2040 = vrot.slane %v2038, 4
      %v2041 = vor.u32 %v2040, %v2036
      %v2042 = vrot.slane %v2041, 4
      %v2044 = vshll.u32 %v1855, 16
      %v2046 = vrot.slane %v2044, 5
      %v2047 = vsel %vm403, %v2042, %v2046
      %v2048 = vunpack.c.l.b16 %v1869
      %v2049 = vunpack.c.l.b16 %v1879
      %v2050 = vunpack.c.l.b16 %v1893
      %v2051 = vunpack.c.l.b16 %v1903
      %v2052 = vunpack.c.l.b16 %v1917
      %v2053 = vunpack.c.l.b16 %v1927
      %v2054 = vunpack.c.l.b16 %v1941
      %v2055 = vunpack.c.l.b16 %v1951
      %v2056 = vunpack.c.l.b16 %v1965
      %v2057 = vunpack.c.l.b16 %v1975
      %v2058 = vunpack.c.l.b16 %v1989
      %v2059 = vunpack.c.l.b16 %v1999
      %v2060 = vunpack.c.l.b16 %v2013
      %v2061 = vunpack.c.l.b16 %v2023
      %v2062 = vunpack.c.l.b16 %v2037
      %v2063 = vunpack.c.l.b16 %v2047
      %v2064 = vpack.c.b16 %v2049, %v2048
      %v2065 = vpack.c.b16 %v2051, %v2050
      %v2066 = vpack.c.b16 %v2053, %v2052
      %v2067 = vpack.c.b16 %v2055, %v2054
      %v2068 = vpack.c.b16 %v2057, %v2056
      %v2069 = vpack.c.b16 %v2059, %v2058
      %v2070 = vpack.c.b16 %v2061, %v2060
      %v2071 = vpack.c.b16 %v2063, %v2062
      %2072 = vrot.lane.b32.xlu0 %v2064, 40
      %v2073 = vpop.permute.xlu0 %2072
      %2074 = vrot.lane.b32.xlu0 %v2065, 40
      %v2075 = vpop.permute.xlu0 %2074
      %2076 = vrot.lane.b32.xlu0 %v2066, 40
      %v2077 = vpop.permute.xlu0 %2076
      %2078 = vrot.lane.b32.xlu0 %v2067, 40
      %v2079 = vpop.permute.xlu0 %2078
      %2080 = vrot.lane.b32.xlu0 %v2068, 40
      %v2081 = vpop.permute.xlu0 %2080
      %2082 = vrot.lane.b32.xlu0 %v2069, 40
      %v2083 = vpop.permute.xlu0 %2082
      %2084 = vrot.lane.b32.xlu0 %v2070, 40
      %v2085 = vpop.permute.xlu0 %2084
      %2086 = vrot.lane.b32.xlu0 %v2071, 40
      %v2087 = vpop.permute.xlu0 %2086
      %vm2096 = vcmask 359744
      %2097 = vst.msk [vmem:[#allocation2] sm:$0xff] %vm2096, %v2073
      %2098 = vst.msk [vmem:[#allocation2 + $0x8] sm:$0xff] %vm2096, %v2075
      %2099 = vst.msk [vmem:[#allocation2 + $0x10] sm:$0xff] %vm2096, %v2077
      %2100 = vst.msk [vmem:[#allocation2 + $0x18] sm:$0xff] %vm2096, %v2079
      %2101 = vst.msk [vmem:[#allocation2 + $0x20] sm:$0xff] %vm2096, %v2081
      %2102 = vst.msk [vmem:[#allocation2 + $0x28] sm:$0xff] %vm2096, %v2083
      %2103 = vst.msk [vmem:[#allocation2 + $0x30] sm:$0xff] %vm2096, %v2085
      %2104 = vst.msk [vmem:[#allocation2 + $0x38] sm:$0xff] %vm2096, %v2087
      %v2105 = vld [vmem:[%s1742] sm:$0xf]
      %v2106 = vld [vmem:[%s1742 + $0x4] sm:$0xf]
      %v2107 = vld [vmem:[%s1742 + $0x8] sm:$0x1]
      %v2108 = vld [vmem:[%s1742 + $0xc] sm:$0xf]
      %v2109 = vld [vmem:[%s1742 + $0x10] sm:$0xf]
      %v2110 = vld [vmem:[%s1742 + $0x14] sm:$0x1]
      %v2111 = vld [vmem:[%s1742 + $0x18] sm:$0xf]
      %v2112 = vld [vmem:[%s1742 + $0x1c] sm:$0xf]
      %v2113 = vld [vmem:[%s1742 + $0x20] sm:$0x1]
      %v2114 = vld [vmem:[%s1742 + $0x24] sm:$0xf]
      %v2115 = vld [vmem:[%s1742 + $0x28] sm:$0xf]
      %v2116 = vld [vmem:[%s1742 + $0x2c] sm:$0x1]
      %v2117 = vld [vmem:[%s1742 + $0x30] sm:$0xf]
      %v2118 = vld [vmem:[%s1742 + $0x34] sm:$0xf]
      %v2119 = vld [vmem:[%s1742 + $0x38] sm:$0x1]
      %v2120 = vld [vmem:[%s1742 + $0x3c] sm:$0xf]
      %v2121 = vld [vmem:[%s1742 + $0x40] sm:$0xf]
      %v2122 = vld [vmem:[%s1742 + $0x44] sm:$0x1]
      %v2123 = vld [vmem:[%s1742 + $0x48] sm:$0xf]
      %v2124 = vld [vmem:[%s1742 + $0x4c] sm:$0xf]
      %v2125 = vld [vmem:[%s1742 + $0x50] sm:$0x1]
      %v2126 = vld [vmem:[%s1742 + $0x54] sm:$0xf]
      %v2127 = vld [vmem:[%s1742 + $0x58] sm:$0xf]
      %v2128 = vld [vmem:[%s1742 + $0x5c] sm:$0x1]
      %v2130 = vshrl.u32 %v2105, 16
      %v2132 = vrot.slane %v2130, 4
      %v2133 = vshll.u32 %v2105, 16
      %v2135 = vrot.slane %v2133, 5
      %v2136 = vor.u32 %v2132, %v2135
      %v2137 = vrot.slane %v2136, 4
      %v2139 = vshll.u32 %v2106, 16
      %v2141 = vrot.slane %v2139, 5
      %v2142 = vsel %vm403, %v2137, %v2141
      %v2143 = vshrl.u32 %v2106, 16
      %v2145 = vrot.slane %v2143, 4
      %v2146 = vor.u32 %v2145, %v2141
      %v2147 = vrot.slane %v2146, 4
      %v2149 = vshll.u32 %v2107, 16
      %v2151 = vrot.slane %v2149, 5
      %v2152 = vsel %vm403, %v2147, %v2151
      %v2154 = vshrl.u32 %v2108, 16
      %v2156 = vrot.slane %v2154, 4
      %v2157 = vshll.u32 %v2108, 16
      %v2159 = vrot.slane %v2157, 5
      %v2160 = vor.u32 %v2156, %v2159
      %v2161 = vrot.slane %v2160, 4
      %v2163 = vshll.u32 %v2109, 16
      %v2165 = vrot.slane %v2163, 5
      %v2166 = vsel %vm403, %v2161, %v2165
      %v2167 = vshrl.u32 %v2109, 16
      %v2169 = vrot.slane %v2167, 4
      %v2170 = vor.u32 %v2169, %v2165
      %v2171 = vrot.slane %v2170, 4
      %v2173 = vshll.u32 %v2110, 16
      %v2175 = vrot.slane %v2173, 5
      %v2176 = vsel %vm403, %v2171, %v2175
      %v2178 = vshrl.u32 %v2111, 16
      %v2180 = vrot.slane %v2178, 4
      %v2181 = vshll.u32 %v2111, 16
      %v2183 = vrot.slane %v2181, 5
      %v2184 = vor.u32 %v2180, %v2183
      %v2185 = vrot.slane %v2184, 4
      %v2187 = vshll.u32 %v2112, 16
      %v2189 = vrot.slane %v2187, 5
      %v2190 = vsel %vm403, %v2185, %v2189
      %v2191 = vshrl.u32 %v2112, 16
      %v2193 = vrot.slane %v2191, 4
      %v2194 = vor.u32 %v2193, %v2189
      %v2195 = vrot.slane %v2194, 4
      %v2197 = vshll.u32 %v2113, 16
      %v2199 = vrot.slane %v2197, 5
      %v2200 = vsel %vm403, %v2195, %v2199
      %v2202 = vshrl.u32 %v2114, 16
      %v2204 = vrot.slane %v2202, 4
      %v2205 = vshll.u32 %v2114, 16
      %v2207 = vrot.slane %v2205, 5
      %v2208 = vor.u32 %v2204, %v2207
      %v2209 = vrot.slane %v2208, 4
      %v2211 = vshll.u32 %v2115, 16
      %v2213 = vrot.slane %v2211, 5
      %v2214 = vsel %vm403, %v2209, %v2213
      %v2215 = vshrl.u32 %v2115, 16
      %v2217 = vrot.slane %v2215, 4
      %v2218 = vor.u32 %v2217, %v2213
      %v2219 = vrot.slane %v2218, 4
      %v2221 = vshll.u32 %v2116, 16
      %v2223 = vrot.slane %v2221, 5
      %v2224 = vsel %vm403, %v2219, %v2223
      %v2226 = vshrl.u32 %v2117, 16
      %v2228 = vrot.slane %v2226, 4
      %v2229 = vshll.u32 %v2117, 16
      %v2231 = vrot.slane %v2229, 5
      %v2232 = vor.u32 %v2228, %v2231
      %v2233 = vrot.slane %v2232, 4
      %v2235 = vshll.u32 %v2118, 16
      %v2237 = vrot.slane %v2235, 5
      %v2238 = vsel %vm403, %v2233, %v2237
      %v2239 = vshrl.u32 %v2118, 16
      %v2241 = vrot.slane %v2239, 4
      %v2242 = vor.u32 %v2241, %v2237
      %v2243 = vrot.slane %v2242, 4
      %v2245 = vshll.u32 %v2119, 16
      %v2247 = vrot.slane %v2245, 5
      %v2248 = vsel %vm403, %v2243, %v2247
      %v2250 = vshrl.u32 %v2120, 16
      %v2252 = vrot.slane %v2250, 4
      %v2253 = vshll.u32 %v2120, 16
      %v2255 = vrot.slane %v2253, 5
      %v2256 = vor.u32 %v2252, %v2255
      %v2257 = vrot.slane %v2256, 4
      %v2259 = vshll.u32 %v2121, 16
      %v2261 = vrot.slane %v2259, 5
      %v2262 = vsel %vm403, %v2257, %v2261
      %v2263 = vshrl.u32 %v2121, 16
      %v2265 = vrot.slane %v2263, 4
      %v2266 = vor.u32 %v2265, %v2261
      %v2267 = vrot.slane %v2266, 4
      %v2269 = vshll.u32 %v2122, 16
      %v2271 = vrot.slane %v2269, 5
      %v2272 = vsel %vm403, %v2267, %v2271
      %v2274 = vshrl.u32 %v2123, 16
      %v2276 = vrot.slane %v2274, 4
      %v2277 = vshll.u32 %v2123, 16
      %v2279 = vrot.slane %v2277, 5
      %v2280 = vor.u32 %v2276, %v2279
      %v2281 = vrot.slane %v2280, 4
      %v2283 = vshll.u32 %v2124, 16
      %v2285 = vrot.slane %v2283, 5
      %v2286 = vsel %vm403, %v2281, %v2285
      %v2287 = vshrl.u32 %v2124, 16
      %v2289 = vrot.slane %v2287, 4
      %v2290 = vor.u32 %v2289, %v2285
      %v2291 = vrot.slane %v2290, 4
      %v2293 = vshll.u32 %v2125, 16
      %v2295 = vrot.slane %v2293, 5
      %v2296 = vsel %vm403, %v2291, %v2295
      %v2298 = vshrl.u32 %v2126, 16
      %v2300 = vrot.slane %v2298, 4
      %v2301 = vshll.u32 %v2126, 16
      %v2303 = vrot.slane %v2301, 5
      %v2304 = vor.u32 %v2300, %v2303
      %v2305 = vrot.slane %v2304, 4
      %v2307 = vshll.u32 %v2127, 16
      %v2309 = vrot.slane %v2307, 5
      %v2310 = vsel %vm403, %v2305, %v2309
      %v2311 = vshrl.u32 %v2127, 16
      %v2313 = vrot.slane %v2311, 4
      %v2314 = vor.u32 %v2313, %v2309
      %v2315 = vrot.slane %v2314, 4
      %v2317 = vshll.u32 %v2128, 16
      %v2319 = vrot.slane %v2317, 5
      %v2320 = vsel %vm403, %v2315, %v2319
      %v2321 = vunpack.c.l.b16 %v2142
      %v2322 = vunpack.c.l.b16 %v2152
      %v2323 = vunpack.c.l.b16 %v2166
      %v2324 = vunpack.c.l.b16 %v2176
      %v2325 = vunpack.c.l.b16 %v2190
      %v2326 = vunpack.c.l.b16 %v2200
      %v2327 = vunpack.c.l.b16 %v2214
      %v2328 = vunpack.c.l.b16 %v2224
      %v2329 = vunpack.c.l.b16 %v2238
      %v2330 = vunpack.c.l.b16 %v2248
      %v2331 = vunpack.c.l.b16 %v2262
      %v2332 = vunpack.c.l.b16 %v2272
      %v2333 = vunpack.c.l.b16 %v2286
      %v2334 = vunpack.c.l.b16 %v2296
      %v2335 = vunpack.c.l.b16 %v2310
      %v2336 = vunpack.c.l.b16 %v2320
      %v2337 = vpack.c.b16 %v2322, %v2321
      %v2338 = vpack.c.b16 %v2324, %v2323
      %v2339 = vpack.c.b16 %v2326, %v2325
      %v2340 = vpack.c.b16 %v2328, %v2327
      %v2341 = vpack.c.b16 %v2330, %v2329
      %v2342 = vpack.c.b16 %v2332, %v2331
      %v2343 = vpack.c.b16 %v2334, %v2333
      %v2344 = vpack.c.b16 %v2336, %v2335
      %2345 = vrot.lane.b32.xlu0 %v2337, 44
      %v2346 = vpop.permute.xlu0 %2345
      %2347 = vrot.lane.b32.xlu0 %v2338, 44
      %v2348 = vpop.permute.xlu0 %2347
      %2349 = vrot.lane.b32.xlu0 %v2339, 44
      %v2350 = vpop.permute.xlu0 %2349
      %2351 = vrot.lane.b32.xlu0 %v2340, 44
      %v2352 = vpop.permute.xlu0 %2351
      %2353 = vrot.lane.b32.xlu0 %v2341, 44
      %v2354 = vpop.permute.xlu0 %2353
      %2355 = vrot.lane.b32.xlu0 %v2342, 44
      %v2356 = vpop.permute.xlu0 %2355
      %2357 = vrot.lane.b32.xlu0 %v2343, 44
      %v2358 = vpop.permute.xlu0 %2357
      %2359 = vrot.lane.b32.xlu0 %v2344, 44
      %v2360 = vpop.permute.xlu0 %2359
      %vm2369 = vcmask 392544
      %2370 = vst.msk [vmem:[#allocation2] sm:$0xff] %vm2369, %v2346
      %2371 = vst.msk [vmem:[#allocation2 + $0x8] sm:$0xff] %vm2369, %v2348
      %2372 = vst.msk [vmem:[#allocation2 + $0x10] sm:$0xff] %vm2369, %v2350
      %2373 = vst.msk [vmem:[#allocation2 + $0x18] sm:$0xff] %vm2369, %v2352
      %2374 = vst.msk [vmem:[#allocation2 + $0x20] sm:$0xff] %vm2369, %v2354
      %2375 = vst.msk [vmem:[#allocation2 + $0x28] sm:$0xff] %vm2369, %v2356
      %2376 = vst.msk [vmem:[#allocation2 + $0x30] sm:$0xff] %vm2369, %v2358
      %2377 = vst.msk [vmem:[#allocation2 + $0x38] sm:$0xff] %vm2369, %v2360
      %s2378 = scalar_lea.vmem %s192, 228
      %v2379 = vld [vmem:[%s2378] sm:$0xf]
      %v2380 = vld [vmem:[%s2378 + $0x4] sm:$0xf]
      %v2381 = vld [vmem:[%s2378 + $0xc] sm:$0xf]
      %v2382 = vld [vmem:[%s2378 + $0x10] sm:$0xf]
      %v2383 = vld [vmem:[%s2378 + $0x18] sm:$0xf]
      %v2384 = vld [vmem:[%s2378 + $0x1c] sm:$0xf]
      %v2385 = vld [vmem:[%s2378 + $0x24] sm:$0xf]
      %v2386 = vld [vmem:[%s2378 + $0x28] sm:$0xf]
      %v2387 = vld [vmem:[%s2378 + $0x30] sm:$0xf]
      %v2388 = vld [vmem:[%s2378 + $0x34] sm:$0xf]
      %v2389 = vld [vmem:[%s2378 + $0x3c] sm:$0xf]
      %v2390 = vld [vmem:[%s2378 + $0x40] sm:$0xf]
      %v2391 = vld [vmem:[%s2378 + $0x48] sm:$0xf]
      %v2392 = vld [vmem:[%s2378 + $0x4c] sm:$0xf]
      %v2393 = vld [vmem:[%s2378 + $0x54] sm:$0xf]
      %v2394 = vld [vmem:[%s2378 + $0x58] sm:$0xf]
      %v2411 = vunpack.c.l.b16 %v2379
      %v2412 = vunpack.c.l.b16 %v2380
      %v2413 = vunpack.c.l.b16 %v2381
      %v2414 = vunpack.c.l.b16 %v2382
      %v2415 = vunpack.c.l.b16 %v2383
      %v2416 = vunpack.c.l.b16 %v2384
      %v2417 = vunpack.c.l.b16 %v2385
      %v2418 = vunpack.c.l.b16 %v2386
      %v2419 = vunpack.c.l.b16 %v2387
      %v2420 = vunpack.c.l.b16 %v2388
      %v2421 = vunpack.c.l.b16 %v2389
      %v2422 = vunpack.c.l.b16 %v2390
      %v2423 = vunpack.c.l.b16 %v2391
      %v2424 = vunpack.c.l.b16 %v2392
      %v2425 = vunpack.c.l.b16 %v2393
      %v2426 = vunpack.c.l.b16 %v2394
      %v2427 = vpack.c.b16 %v2412, %v2411
      %v2428 = vpack.c.b16 %v2414, %v2413
      %v2429 = vpack.c.b16 %v2416, %v2415
      %v2430 = vpack.c.b16 %v2418, %v2417
      %v2431 = vpack.c.b16 %v2420, %v2419
      %v2432 = vpack.c.b16 %v2422, %v2421
      %v2433 = vpack.c.b16 %v2424, %v2423
      %v2434 = vpack.c.b16 %v2426, %v2425
      %2435 = vrot.lane.b32.xlu0 %v2427, 48
      %v2436 = vpop.permute.xlu0 %2435
      %2437 = vrot.lane.b32.xlu0 %v2428, 48
      %v2438 = vpop.permute.xlu0 %2437
      %2439 = vrot.lane.b32.xlu0 %v2429, 48
      %v2440 = vpop.permute.xlu0 %2439
      %2441 = vrot.lane.b32.xlu0 %v2430, 48
      %v2442 = vpop.permute.xlu0 %2441
      %2443 = vrot.lane.b32.xlu0 %v2431, 48
      %v2444 = vpop.permute.xlu0 %2443
      %2445 = vrot.lane.b32.xlu0 %v2432, 48
      %v2446 = vpop.permute.xlu0 %2445
      %2447 = vrot.lane.b32.xlu0 %v2433, 48
      %v2448 = vpop.permute.xlu0 %2447
      %2449 = vrot.lane.b32.xlu0 %v2434, 48
      %v2450 = vpop.permute.xlu0 %2449
      %vm2459 = vcmask 425344
      %2460 = vst.msk [vmem:[#allocation2] sm:$0xff] %vm2459, %v2436
      %2461 = vst.msk [vmem:[#allocation2 + $0x8] sm:$0xff] %vm2459, %v2438
      %2462 = vst.msk [vmem:[#allocation2 + $0x10] sm:$0xff] %vm2459, %v2440
      %2463 = vst.msk [vmem:[#allocation2 + $0x18] sm:$0xff] %vm2459, %v2442
      %2464 = vst.msk [vmem:[#allocation2 + $0x20] sm:$0xff] %vm2459, %v2444
      %2465 = vst.msk [vmem:[#allocation2 + $0x28] sm:$0xff] %vm2459, %v2446
      %2466 = vst.msk [vmem:[#allocation2 + $0x30] sm:$0xff] %vm2459, %v2448
      %2467 = vst.msk [vmem:[#allocation2 + $0x38] sm:$0xff] %vm2459, %v2450
      %s2468 = scalar_lea.vmem %s192, 336
      %v2469 = vld [vmem:[%s2468] sm:$0xf]
      %v2470 = vld [vmem:[%s2468 + $0x4] sm:$0xf]
      %v2471 = vld [vmem:[%s2468 + $0xc] sm:$0xf]
      %v2472 = vld [vmem:[%s2468 + $0x10] sm:$0xf]
      %v2473 = vld [vmem:[%s2468 + $0x18] sm:$0xf]
      %v2474 = vld [vmem:[%s2468 + $0x1c] sm:$0xf]
      %v2475 = vld [vmem:[%s2468 + $0x24] sm:$0xf]
      %v2476 = vld [vmem:[%s2468 + $0x28] sm:$0xf]
      %v2477 = vld [vmem:[%s2468 + $0x30] sm:$0xf]
      %v2478 = vld [vmem:[%s2468 + $0x34] sm:$0xf]
      %v2479 = vld [vmem:[%s2468 + $0x3c] sm:$0xf]
      %v2480 = vld [vmem:[%s2468 + $0x40] sm:$0xf]
      %v2481 = vld [vmem:[%s2468 + $0x48] sm:$0xf]
      %v2482 = vld [vmem:[%s2468 + $0x4c] sm:$0xf]
      %v2483 = vld [vmem:[%s2468 + $0x54] sm:$0xf]
      %v2484 = vld [vmem:[%s2468 + $0x58] sm:$0xf]
      %v2501 = vunpack.c.l.b16 %v2469
      %v2502 = vunpack.c.l.b16 %v2470
      %v2503 = vunpack.c.l.b16 %v2471
      %v2504 = vunpack.c.l.b16 %v2472
      %v2505 = vunpack.c.l.b16 %v2473
      %v2506 = vunpack.c.l.b16 %v2474
      %v2507 = vunpack.c.l.b16 %v2475
      %v2508 = vunpack.c.l.b16 %v2476
      %v2509 = vunpack.c.l.b16 %v2477
      %v2510 = vunpack.c.l.b16 %v2478
      %v2511 = vunpack.c.l.b16 %v2479
      %v2512 = vunpack.c.l.b16 %v2480
      %v2513 = vunpack.c.l.b16 %v2481
      %v2514 = vunpack.c.l.b16 %v2482
      %v2515 = vunpack.c.l.b16 %v2483
      %v2516 = vunpack.c.l.b16 %v2484
      %v2517 = vpack.c.b16 %v2502, %v2501
      %v2518 = vpack.c.b16 %v2504, %v2503
      %v2519 = vpack.c.b16 %v2506, %v2505
      %v2520 = vpack.c.b16 %v2508, %v2507
      %v2521 = vpack.c.b16 %v2510, %v2509
      %v2522 = vpack.c.b16 %v2512, %v2511
      %v2523 = vpack.c.b16 %v2514, %v2513
      %v2524 = vpack.c.b16 %v2516, %v2515
      %2525 = vrot.lane.b32.xlu0 %v2517, 52
      %v2526 = vpop.permute.xlu0 %2525
      %2527 = vrot.lane.b32.xlu0 %v2518, 52
      %v2528 = vpop.permute.xlu0 %2527
      %2529 = vrot.lane.b32.xlu0 %v2519, 52
      %v2530 = vpop.permute.xlu0 %2529
      %2531 = vrot.lane.b32.xlu0 %v2520, 52
      %v2532 = vpop.permute.xlu0 %2531
      %2533 = vrot.lane.b32.xlu0 %v2521, 52
      %v2534 = vpop.permute.xlu0 %2533
      %2535 = vrot.lane.b32.xlu0 %v2522, 52
      %v2536 = vpop.permute.xlu0 %2535
      %2537 = vrot.lane.b32.xlu0 %v2523, 52
      %v2538 = vpop.permute.xlu0 %2537
      %2539 = vrot.lane.b32.xlu0 %v2524, 52
      %v2540 = vpop.permute.xlu0 %2539
      %vm2549 = vcmask 458144
      %2550 = vst.msk [vmem:[#allocation2] sm:$0xff] %vm2549, %v2526
      %2551 = vst.msk [vmem:[#allocation2 + $0x8] sm:$0xff] %vm2549, %v2528
      %2552 = vst.msk [vmem:[#allocation2 + $0x10] sm:$0xff] %vm2549, %v2530
      %2553 = vst.msk [vmem:[#allocation2 + $0x18] sm:$0xff] %vm2549, %v2532
      %2554 = vst.msk [vmem:[#allocation2 + $0x20] sm:$0xff] %vm2549, %v2534
      %2555 = vst.msk [vmem:[#allocation2 + $0x28] sm:$0xff] %vm2549, %v2536
      %2556 = vst.msk [vmem:[#allocation2 + $0x30] sm:$0xff] %vm2549, %v2538
      %2557 = vst.msk [vmem:[#allocation2 + $0x38] sm:$0xff] %vm2549, %v2540
      %v2558 = vld [vmem:[%s2378] sm:$0xf]
      %v2559 = vld [vmem:[%s2378 + $0x4] sm:$0xf]
      %v2560 = vld [vmem:[%s2378 + $0x8] sm:$0x1]
      %v2561 = vld [vmem:[%s2378 + $0xc] sm:$0xf]
      %v2562 = vld [vmem:[%s2378 + $0x10] sm:$0xf]
      %v2563 = vld [vmem:[%s2378 + $0x14] sm:$0x1]
      %v2564 = vld [vmem:[%s2378 + $0x18] sm:$0xf]
      %v2565 = vld [vmem:[%s2378 + $0x1c] sm:$0xf]
      %v2566 = vld [vmem:[%s2378 + $0x20] sm:$0x1]
      %v2567 = vld [vmem:[%s2378 + $0x24] sm:$0xf]
      %v2568 = vld [vmem:[%s2378 + $0x28] sm:$0xf]
      %v2569 = vld [vmem:[%s2378 + $0x2c] sm:$0x1]
      %v2570 = vld [vmem:[%s2378 + $0x30] sm:$0xf]
      %v2571 = vld [vmem:[%s2378 + $0x34] sm:$0xf]
      %v2572 = vld [vmem:[%s2378 + $0x38] sm:$0x1]
      %v2573 = vld [vmem:[%s2378 + $0x3c] sm:$0xf]
      %v2574 = vld [vmem:[%s2378 + $0x40] sm:$0xf]
      %v2575 = vld [vmem:[%s2378 + $0x44] sm:$0x1]
      %v2576 = vld [vmem:[%s2378 + $0x48] sm:$0xf]
      %v2577 = vld [vmem:[%s2378 + $0x4c] sm:$0xf]
      %v2578 = vld [vmem:[%s2378 + $0x50] sm:$0x1]
      %v2579 = vld [vmem:[%s2378 + $0x54] sm:$0xf]
      %v2580 = vld [vmem:[%s2378 + $0x58] sm:$0xf]
      %v2581 = vld [vmem:[%s2378 + $0x5c] sm:$0x1]
      %v2583 = vshrl.u32 %v2558, 16
      %v2585 = vrot.slane %v2583, 4
      %v2586 = vshll.u32 %v2558, 16
      %v2588 = vrot.slane %v2586, 5
      %v2589 = vor.u32 %v2585, %v2588
      %v2590 = vrot.slane %v2589, 4
      %v2592 = vshll.u32 %v2559, 16
      %v2594 = vrot.slane %v2592, 5
      %v2595 = vsel %vm403, %v2590, %v2594
      %v2596 = vshrl.u32 %v2559, 16
      %v2598 = vrot.slane %v2596, 4
      %v2599 = vor.u32 %v2598, %v2594
      %v2600 = vrot.slane %v2599, 4
      %v2602 = vshll.u32 %v2560, 16
      %v2604 = vrot.slane %v2602, 5
      %v2605 = vsel %vm403, %v2600, %v2604
      %v2607 = vshrl.u32 %v2561, 16
      %v2609 = vrot.slane %v2607, 4
      %v2610 = vshll.u32 %v2561, 16
      %v2612 = vrot.slane %v2610, 5
      %v2613 = vor.u32 %v2609, %v2612
      %v2614 = vrot.slane %v2613, 4
      %v2616 = vshll.u32 %v2562, 16
      %v2618 = vrot.slane %v2616, 5
      %v2619 = vsel %vm403, %v2614, %v2618
      %v2620 = vshrl.u32 %v2562, 16
      %v2622 = vrot.slane %v2620, 4
      %v2623 = vor.u32 %v2622, %v2618
      %v2624 = vrot.slane %v2623, 4
      %v2626 = vshll.u32 %v2563, 16
      %v2628 = vrot.slane %v2626, 5
      %v2629 = vsel %vm403, %v2624, %v2628
      %v2631 = vshrl.u32 %v2564, 16
      %v2633 = vrot.slane %v2631, 4
      %v2634 = vshll.u32 %v2564, 16
      %v2636 = vrot.slane %v2634, 5
      %v2637 = vor.u32 %v2633, %v2636
      %v2638 = vrot.slane %v2637, 4
      %v2640 = vshll.u32 %v2565, 16
      %v2642 = vrot.slane %v2640, 5
      %v2643 = vsel %vm403, %v2638, %v2642
      %v2644 = vshrl.u32 %v2565, 16
      %v2646 = vrot.slane %v2644, 4
      %v2647 = vor.u32 %v2646, %v2642
      %v2648 = vrot.slane %v2647, 4
      %v2650 = vshll.u32 %v2566, 16
      %v2652 = vrot.slane %v2650, 5
      %v2653 = vsel %vm403, %v2648, %v2652
      %v2655 = vshrl.u32 %v2567, 16
      %v2657 = vrot.slane %v2655, 4
      %v2658 = vshll.u32 %v2567, 16
      %v2660 = vrot.slane %v2658, 5
      %v2661 = vor.u32 %v2657, %v2660
      %v2662 = vrot.slane %v2661, 4
      %v2664 = vshll.u32 %v2568, 16
      %v2666 = vrot.slane %v2664, 5
      %v2667 = vsel %vm403, %v2662, %v2666
      %v2668 = vshrl.u32 %v2568, 16
      %v2670 = vrot.slane %v2668, 4
      %v2671 = vor.u32 %v2670, %v2666
      %v2672 = vrot.slane %v2671, 4
      %v2674 = vshll.u32 %v2569, 16
      %v2676 = vrot.slane %v2674, 5
      %v2677 = vsel %vm403, %v2672, %v2676
      %v2679 = vshrl.u32 %v2570, 16
      %v2681 = vrot.slane %v2679, 4
      %v2682 = vshll.u32 %v2570, 16
      %v2684 = vrot.slane %v2682, 5
      %v2685 = vor.u32 %v2681, %v2684
      %v2686 = vrot.slane %v2685, 4
      %v2688 = vshll.u32 %v2571, 16
      %v2690 = vrot.slane %v2688, 5
      %v2691 = vsel %vm403, %v2686, %v2690
      %v2692 = vshrl.u32 %v2571, 16
      %v2694 = vrot.slane %v2692, 4
      %v2695 = vor.u32 %v2694, %v2690
      %v2696 = vrot.slane %v2695, 4
      %v2698 = vshll.u32 %v2572, 16
      %v2700 = vrot.slane %v2698, 5
      %v2701 = vsel %vm403, %v2696, %v2700
      %v2703 = vshrl.u32 %v2573, 16
      %v2705 = vrot.slane %v2703, 4
      %v2706 = vshll.u32 %v2573, 16
      %v2708 = vrot.slane %v2706, 5
      %v2709 = vor.u32 %v2705, %v2708
      %v2710 = vrot.slane %v2709, 4
      %v2712 = vshll.u32 %v2574, 16
      %v2714 = vrot.slane %v2712, 5
      %v2715 = vsel %vm403, %v2710, %v2714
      %v2716 = vshrl.u32 %v2574, 16
      %v2718 = vrot.slane %v2716, 4
      %v2719 = vor.u32 %v2718, %v2714
      %v2720 = vrot.slane %v2719, 4
      %v2722 = vshll.u32 %v2575, 16
      %v2724 = vrot.slane %v2722, 5
      %v2725 = vsel %vm403, %v2720, %v2724
      %v2727 = vshrl.u32 %v2576, 16
      %v2729 = vrot.slane %v2727, 4
      %v2730 = vshll.u32 %v2576, 16
      %v2732 = vrot.slane %v2730, 5
      %v2733 = vor.u32 %v2729, %v2732
      %v2734 = vrot.slane %v2733, 4
      %v2736 = vshll.u32 %v2577, 16
      %v2738 = vrot.slane %v2736, 5
      %v2739 = vsel %vm403, %v2734, %v2738
      %v2740 = vshrl.u32 %v2577, 16
      %v2742 = vrot.slane %v2740, 4
      %v2743 = vor.u32 %v2742, %v2738
      %v2744 = vrot.slane %v2743, 4
      %v2746 = vshll.u32 %v2578, 16
      %v2748 = vrot.slane %v2746, 5
      %v2749 = vsel %vm403, %v2744, %v2748
      %v2751 = vshrl.u32 %v2579, 16
      %v2753 = vrot.slane %v2751, 4
      %v2754 = vshll.u32 %v2579, 16
      %v2756 = vrot.slane %v2754, 5
      %v2757 = vor.u32 %v2753, %v2756
      %v2758 = vrot.slane %v2757, 4
      %v2760 = vshll.u32 %v2580, 16
      %v2762 = vrot.slane %v2760, 5
      %v2763 = vsel %vm403, %v2758, %v2762
      %v2764 = vshrl.u32 %v2580, 16
      %v2766 = vrot.slane %v2764, 4
      %v2767 = vor.u32 %v2766, %v2762
      %v2768 = vrot.slane %v2767, 4
      %v2770 = vshll.u32 %v2581, 16
      %v2772 = vrot.slane %v2770, 5
      %v2773 = vsel %vm403, %v2768, %v2772
      %v2774 = vunpack.c.l.b16 %v2595
      %v2775 = vunpack.c.l.b16 %v2605
      %v2776 = vunpack.c.l.b16 %v2619
      %v2777 = vunpack.c.l.b16 %v2629
      %v2778 = vunpack.c.l.b16 %v2643
      %v2779 = vunpack.c.l.b16 %v2653
      %v2780 = vunpack.c.l.b16 %v2667
      %v2781 = vunpack.c.l.b16 %v2677
      %v2782 = vunpack.c.l.b16 %v2691
      %v2783 = vunpack.c.l.b16 %v2701
      %v2784 = vunpack.c.l.b16 %v2715
      %v2785 = vunpack.c.l.b16 %v2725
      %v2786 = vunpack.c.l.b16 %v2739
      %v2787 = vunpack.c.l.b16 %v2749
      %v2788 = vunpack.c.l.b16 %v2763
      %v2789 = vunpack.c.l.b16 %v2773
      %v2790 = vpack.c.b16 %v2775, %v2774
      %v2791 = vpack.c.b16 %v2777, %v2776
      %v2792 = vpack.c.b16 %v2779, %v2778
      %v2793 = vpack.c.b16 %v2781, %v2780
      %v2794 = vpack.c.b16 %v2783, %v2782
      %v2795 = vpack.c.b16 %v2785, %v2784
      %v2796 = vpack.c.b16 %v2787, %v2786
      %v2797 = vpack.c.b16 %v2789, %v2788
      %2798 = vrot.lane.b32.xlu0 %v2790, 56
      %v2799 = vpop.permute.xlu0 %2798
      %2800 = vrot.lane.b32.xlu0 %v2791, 56
      %v2801 = vpop.permute.xlu0 %2800
      %2802 = vrot.lane.b32.xlu0 %v2792, 56
      %v2803 = vpop.permute.xlu0 %2802
      %2804 = vrot.lane.b32.xlu0 %v2793, 56
      %v2805 = vpop.permute.xlu0 %2804
      %2806 = vrot.lane.b32.xlu0 %v2794, 56
      %v2807 = vpop.permute.xlu0 %2806
      %2808 = vrot.lane.b32.xlu0 %v2795, 56
      %v2809 = vpop.permute.xlu0 %2808
      %2810 = vrot.lane.b32.xlu0 %v2796, 56
      %v2811 = vpop.permute.xlu0 %2810
      %2812 = vrot.lane.b32.xlu0 %v2797, 56
      %v2813 = vpop.permute.xlu0 %2812
      %vm2822 = vcmask 490944
      %2823 = vst.msk [vmem:[#allocation2] sm:$0xff] %vm2822, %v2799
      %2824 = vst.msk [vmem:[#allocation2 + $0x8] sm:$0xff] %vm2822, %v2801
      %2825 = vst.msk [vmem:[#allocation2 + $0x10] sm:$0xff] %vm2822, %v2803
      %2826 = vst.msk [vmem:[#allocation2 + $0x18] sm:$0xff] %vm2822, %v2805
      %2827 = vst.msk [vmem:[#allocation2 + $0x20] sm:$0xff] %vm2822, %v2807
      %2828 = vst.msk [vmem:[#allocation2 + $0x28] sm:$0xff] %vm2822, %v2809
      %2829 = vst.msk [vmem:[#allocation2 + $0x30] sm:$0xff] %vm2822, %v2811
      %2830 = vst.msk [vmem:[#allocation2 + $0x38] sm:$0xff] %vm2822, %v2813
      %v2831 = vld [vmem:[%s2468] sm:$0xf]
      %v2832 = vld [vmem:[%s2468 + $0x4] sm:$0xf]
      %v2833 = vld [vmem:[%s2468 + $0x8] sm:$0x1]
      %v2834 = vld [vmem:[%s2468 + $0xc] sm:$0xf]
      %v2835 = vld [vmem:[%s2468 + $0x10] sm:$0xf]
      %v2836 = vld [vmem:[%s2468 + $0x14] sm:$0x1]
      %v2837 = vld [vmem:[%s2468 + $0x18] sm:$0xf]
      %v2838 = vld [vmem:[%s2468 + $0x1c] sm:$0xf]
      %v2839 = vld [vmem:[%s2468 + $0x20] sm:$0x1]
      %v2840 = vld [vmem:[%s2468 + $0x24] sm:$0xf]
      %v2841 = vld [vmem:[%s2468 + $0x28] sm:$0xf]
      %v2842 = vld [vmem:[%s2468 + $0x2c] sm:$0x1]
      %v2843 = vld [vmem:[%s2468 + $0x30] sm:$0xf]
      %v2844 = vld [vmem:[%s2468 + $0x34] sm:$0xf]
      %v2845 = vld [vmem:[%s2468 + $0x38] sm:$0x1]
      %v2846 = vld [vmem:[%s2468 + $0x3c] sm:$0xf]
      %v2847 = vld [vmem:[%s2468 + $0x40] sm:$0xf]
      %v2848 = vld [vmem:[%s2468 + $0x44] sm:$0x1]
      %v2849 = vld [vmem:[%s2468 + $0x48] sm:$0xf]
      %v2850 = vld [vmem:[%s2468 + $0x4c] sm:$0xf]
      %v2851 = vld [vmem:[%s2468 + $0x50] sm:$0x1]
      %v2852 = vld [vmem:[%s2468 + $0x54] sm:$0xf]
      %v2853 = vld [vmem:[%s2468 + $0x58] sm:$0xf]
      %v2854 = vld [vmem:[%s2468 + $0x5c] sm:$0x1]
      %v2856 = vshrl.u32 %v2831, 16
      %v2858 = vrot.slane %v2856, 4
      %v2859 = vshll.u32 %v2831, 16
      %v2861 = vrot.slane %v2859, 5
      %v2862 = vor.u32 %v2858, %v2861
      %v2863 = vrot.slane %v2862, 4
      %v2865 = vshll.u32 %v2832, 16
      %v2867 = vrot.slane %v2865, 5
      %v2868 = vsel %vm403, %v2863, %v2867
      %v2869 = vshrl.u32 %v2832, 16
      %v2871 = vrot.slane %v2869, 4
      %v2872 = vor.u32 %v2871, %v2867
      %v2873 = vrot.slane %v2872, 4
      %v2875 = vshll.u32 %v2833, 16
      %v2877 = vrot.slane %v2875, 5
      %v2878 = vsel %vm403, %v2873, %v2877
      %v2880 = vshrl.u32 %v2834, 16
      %v2882 = vrot.slane %v2880, 4
      %v2883 = vshll.u32 %v2834, 16
      %v2885 = vrot.slane %v2883, 5
      %v2886 = vor.u32 %v2882, %v2885
      %v2887 = vrot.slane %v2886, 4
      %v2889 = vshll.u32 %v2835, 16
      %v2891 = vrot.slane %v2889, 5
      %v2892 = vsel %vm403, %v2887, %v2891
      %v2893 = vshrl.u32 %v2835, 16
      %v2895 = vrot.slane %v2893, 4
      %v2896 = vor.u32 %v2895, %v2891
      %v2897 = vrot.slane %v2896, 4
      %v2899 = vshll.u32 %v2836, 16
      %v2901 = vrot.slane %v2899, 5
      %v2902 = vsel %vm403, %v2897, %v2901
      %v2904 = vshrl.u32 %v2837, 16
      %v2906 = vrot.slane %v2904, 4
      %v2907 = vshll.u32 %v2837, 16
      %v2909 = vrot.slane %v2907, 5
      %v2910 = vor.u32 %v2906, %v2909
      %v2911 = vrot.slane %v2910, 4
      %v2913 = vshll.u32 %v2838, 16
      %v2915 = vrot.slane %v2913, 5
      %v2916 = vsel %vm403, %v2911, %v2915
      %v2917 = vshrl.u32 %v2838, 16
      %v2919 = vrot.slane %v2917, 4
      %v2920 = vor.u32 %v2919, %v2915
      %v2921 = vrot.slane %v2920, 4
      %v2923 = vshll.u32 %v2839, 16
      %v2925 = vrot.slane %v2923, 5
      %v2926 = vsel %vm403, %v2921, %v2925
      %v2928 = vshrl.u32 %v2840, 16
      %v2930 = vrot.slane %v2928, 4
      %v2931 = vshll.u32 %v2840, 16
      %v2933 = vrot.slane %v2931, 5
      %v2934 = vor.u32 %v2930, %v2933
      %v2935 = vrot.slane %v2934, 4
      %v2937 = vshll.u32 %v2841, 16
      %v2939 = vrot.slane %v2937, 5
      %v2940 = vsel %vm403, %v2935, %v2939
      %v2941 = vshrl.u32 %v2841, 16
      %v2943 = vrot.slane %v2941, 4
      %v2944 = vor.u32 %v2943, %v2939
      %v2945 = vrot.slane %v2944, 4
      %v2947 = vshll.u32 %v2842, 16
      %v2949 = vrot.slane %v2947, 5
      %v2950 = vsel %vm403, %v2945, %v2949
      %v2952 = vshrl.u32 %v2843, 16
      %v2954 = vrot.slane %v2952, 4
      %v2955 = vshll.u32 %v2843, 16
      %v2957 = vrot.slane %v2955, 5
      %v2958 = vor.u32 %v2954, %v2957
      %v2959 = vrot.slane %v2958, 4
      %v2961 = vshll.u32 %v2844, 16
      %v2963 = vrot.slane %v2961, 5
      %v2964 = vsel %vm403, %v2959, %v2963
      %v2965 = vshrl.u32 %v2844, 16
      %v2967 = vrot.slane %v2965, 4
      %v2968 = vor.u32 %v2967, %v2963
      %v2969 = vrot.slane %v2968, 4
      %v2971 = vshll.u32 %v2845, 16
      %v2973 = vrot.slane %v2971, 5
      %v2974 = vsel %vm403, %v2969, %v2973
      %v2976 = vshrl.u32 %v2846, 16
      %v2978 = vrot.slane %v2976, 4
      %v2979 = vshll.u32 %v2846, 16
      %v2981 = vrot.slane %v2979, 5
      %v2982 = vor.u32 %v2978, %v2981
      %v2983 = vrot.slane %v2982, 4
      %v2985 = vshll.u32 %v2847, 16
      %v2987 = vrot.slane %v2985, 5
      %v2988 = vsel %vm403, %v2983, %v2987
      %v2989 = vshrl.u32 %v2847, 16
      %v2991 = vrot.slane %v2989, 4
      %v2992 = vor.u32 %v2991, %v2987
      %v2993 = vrot.slane %v2992, 4
      %v2995 = vshll.u32 %v2848, 16
      %v2997 = vrot.slane %v2995, 5
      %v2998 = vsel %vm403, %v2993, %v2997
      %v3000 = vshrl.u32 %v2849, 16
      %v3002 = vrot.slane %v3000, 4
      %v3003 = vshll.u32 %v2849, 16
      %v3005 = vrot.slane %v3003, 5
      %v3006 = vor.u32 %v3002, %v3005
      %v3007 = vrot.slane %v3006, 4
      %v3009 = vshll.u32 %v2850, 16
      %v3011 = vrot.slane %v3009, 5
      %v3012 = vsel %vm403, %v3007, %v3011
      %v3013 = vshrl.u32 %v2850, 16
      %v3015 = vrot.slane %v3013, 4
      %v3016 = vor.u32 %v3015, %v3011
      %v3017 = vrot.slane %v3016, 4
      %v3019 = vshll.u32 %v2851, 16
      %v3021 = vrot.slane %v3019, 5
      %v3022 = vsel %vm403, %v3017, %v3021
      %v3024 = vshrl.u32 %v2852, 16
      %v3026 = vrot.slane %v3024, 4
      %v3027 = vshll.u32 %v2852, 16
      %v3029 = vrot.slane %v3027, 5
      %v3030 = vor.u32 %v3026, %v3029
      %v3031 = vrot.slane %v3030, 4
      %v3033 = vshll.u32 %v2853, 16
      %v3035 = vrot.slane %v3033, 5
      %v3036 = vsel %vm403, %v3031, %v3035
      %v3037 = vshrl.u32 %v2853, 16
      %v3039 = vrot.slane %v3037, 4
      %v3040 = vor.u32 %v3039, %v3035
      %v3041 = vrot.slane %v3040, 4
      %v3043 = vshll.u32 %v2854, 16
      %v3045 = vrot.slane %v3043, 5
      %v3046 = vsel %vm403, %v3041, %v3045
      %v3047 = vunpack.c.l.b16 %v2868
      %v3048 = vunpack.c.l.b16 %v2878
      %v3049 = vunpack.c.l.b16 %v2892
      %v3050 = vunpack.c.l.b16 %v2902
      %v3051 = vunpack.c.l.b16 %v2916
      %v3052 = vunpack.c.l.b16 %v2926
      %v3053 = vunpack.c.l.b16 %v2940
      %v3054 = vunpack.c.l.b16 %v2950
      %v3055 = vunpack.c.l.b16 %v2964
      %v3056 = vunpack.c.l.b16 %v2974
      %v3057 = vunpack.c.l.b16 %v2988
      %v3058 = vunpack.c.l.b16 %v2998
      %v3059 = vunpack.c.l.b16 %v3012
      %v3060 = vunpack.c.l.b16 %v3022
      %v3061 = vunpack.c.l.b16 %v3036
      %v3062 = vunpack.c.l.b16 %v3046
      %v3063 = vpack.c.b16 %v3048, %v3047
      %v3064 = vpack.c.b16 %v3050, %v3049
      %v3065 = vpack.c.b16 %v3052, %v3051
      %v3066 = vpack.c.b16 %v3054, %v3053
      %v3067 = vpack.c.b16 %v3056, %v3055
      %v3068 = vpack.c.b16 %v3058, %v3057
      %v3069 = vpack.c.b16 %v3060, %v3059
      %v3070 = vpack.c.b16 %v3062, %v3061
      %3071 = vrot.lane.b32.xlu0 %v3063, 60
      %v3072 = vpop.permute.xlu0 %3071
      %3073 = vrot.lane.b32.xlu0 %v3064, 60
      %v3074 = vpop.permute.xlu0 %3073
      %3075 = vrot.lane.b32.xlu0 %v3065, 60
      %v3076 = vpop.permute.xlu0 %3075
      %3077 = vrot.lane.b32.xlu0 %v3066, 60
      %v3078 = vpop.permute.xlu0 %3077
      %3079 = vrot.lane.b32.xlu0 %v3067, 60
      %v3080 = vpop.permute.xlu0 %3079
      %3081 = vrot.lane.b32.xlu0 %v3068, 60
      %v3082 = vpop.permute.xlu0 %3081
      %3083 = vrot.lane.b32.xlu0 %v3069, 60
      %v3084 = vpop.permute.xlu0 %3083
      %3085 = vrot.lane.b32.xlu0 %v3070, 60
      %v3086 = vpop.permute.xlu0 %3085
      %vm3095 = vcmask 523744
      %3096 = vst.msk [vmem:[#allocation2] sm:$0xff] %vm3095, %v3072
      %3097 = vst.msk [vmem:[#allocation2 + $0x8] sm:$0xff] %vm3095, %v3074
      %3098 = vst.msk [vmem:[#allocation2 + $0x10] sm:$0xff] %vm3095, %v3076
      %3099 = vst.msk [vmem:[#allocation2 + $0x18] sm:$0xff] %vm3095, %v3078
      %3100 = vst.msk [vmem:[#allocation2 + $0x20] sm:$0xff] %vm3095, %v3080
      %3101 = vst.msk [vmem:[#allocation2 + $0x28] sm:$0xff] %vm3095, %v3082
      %3102 = vst.msk [vmem:[#allocation2 + $0x30] sm:$0xff] %vm3095, %v3084
      %3103 = vst.msk [vmem:[#allocation2 + $0x38] sm:$0xff] %vm3095, %v3086
      %v3104 = vld [vmem:[#allocation2] sm:$0xff]
      %v3105 = vld [vmem:[#allocation2 + $0x8] sm:$0xff]
      %v3106 = vld [vmem:[#allocation2 + $0x10] sm:$0xff]
      %v3107 = vld [vmem:[#allocation2 + $0x18] sm:$0xff]
      %v3108 = vld [vmem:[#allocation2 + $0x20] sm:$0xff]
      %v3109 = vld [vmem:[#allocation2 + $0x28] sm:$0xff]
      %v3110 = vld [vmem:[#allocation2 + $0x30] sm:$0xff]
      %v3111 = vld [vmem:[#allocation2 + $0x38] sm:$0xff]
      %v3112 = vld [vmem:[%s198] sm:$0xf]
      %v3113 = vld [vmem:[%s198 + $0x4] sm:$0xf]
      %v3114 = vld [vmem:[%s198 + $0x8] sm:$0xf]
      %v3115 = vld [vmem:[%s198 + $0xc] sm:$0xf]
      %v3116 = vld [vmem:[%s198 + $0x10] sm:$0xf]
      %v3117 = vld [vmem:[%s198 + $0x14] sm:$0xf]
      %v3118 = vld [vmem:[%s198 + $0x18] sm:$0xf]
      %v3119 = vld [vmem:[%s198 + $0x1c] sm:$0xf]
      %v3128 = vunpack.c.l.b16 %v3112
      %v3129 = vunpack.c.l.b16 %v3113
      %v3130 = vunpack.c.l.b16 %v3114
      %v3131 = vunpack.c.l.b16 %v3115
      %v3132 = vunpack.c.l.b16 %v3116
      %v3133 = vunpack.c.l.b16 %v3117
      %v3134 = vunpack.c.l.b16 %v3118
      %v3135 = vunpack.c.l.b16 %v3119
      %v3136 = vpack.c.b16 %v3129, %v3128
      %v3137 = vpack.c.b16 %v3131, %v3130
      %v3138 = vpack.c.b16 %v3133, %v3132
      %v3139 = vpack.c.b16 %v3135, %v3134
      %vm3144 = vcmask 523264
      %v3146 = vsel %vm3144, %v3104, 0
      %v3149 = vsel %vm3144, %v3105, 0
      %v3152 = vsel %vm3144, %v3106, 0
      %v3155 = vsel %vm3144, %v3107, 0
      %v3158 = vsel %vm3144, %v3108, 0
      %v3161 = vsel %vm3144, %v3109, 0
      %v3164 = vsel %vm3144, %v3110, 0
      %v3167 = vsel %vm3144, %v3111, 0
      %3169 = vmatprep.subr.bf16.mxu0 0
      %3170 = vmatpush1.bf16.msra.mxu0 %v3136
      %3171 = vmatprep.subr.bf16.mxu0 0
      %3172 = vmatpush1.bf16.msra.mxu0 %v3137
      %3173 = vmatprep.subr.bf16.mxu0 0
      %3174 = vmatpush1.bf16.msra.mxu0 %v3138
      %3175 = vmatprep.subr.bf16.mxu0 0
      %3176 = vmatpush1.bf16.msra.mxu0 %v3139
      %3177 = vmatprep.subr.bf16.mxu0 0
      %3178 = vmatpush1.bf16.msra.mxu0 0
      %3179 = vmatprep.subr.bf16.mxu0 0
      %3180 = vmatpush1.bf16.msra.mxu0 0
      %3181 = vmatprep.subr.bf16.mxu0 0
      %3182 = vmatpush1.bf16.msra.mxu0 0
      %3183 = vmatprep.subr.bf16.mxu0 0
      %3184 = vmatpush1.bf16.msra.mxu0 0
      %3185 = vmatprep.subr.bf16.mxu0 0
      %3186 = vmatpush1.bf16.msra.mxu0 0
      %3187 = vmatprep.subr.bf16.mxu0 0
      %3188 = vmatpush1.bf16.msra.mxu0 0
      %3189 = vmatprep.subr.bf16.mxu0 0
      %3190 = vmatpush1.bf16.msra.mxu0 0
      %3191 = vmatprep.subr.bf16.mxu0 0
      %3192 = vmatpush1.bf16.msra.mxu0 0
      %3193 = vmatprep.subr.bf16.mxu0 0
      %3194 = vmatpush1.bf16.msra.mxu0 0
      %3195 = vmatprep.subr.bf16.mxu0 0
      %3196 = vmatpush1.bf16.msra.mxu0 0
      %3197 = vmatprep.subr.bf16.mxu0 0
      %3198 = vmatpush1.bf16.msra.mxu0 0
      %3199 = vmatprep.subr.bf16.mxu0 0
      %3200 = vmatpush1.bf16.msra.mxu0 0
      %3201 = vmatprep.mubr.bf16.mxu0 0
      %3202 = vmatmul.mubr.bf16.gmra.mrb[0].mxu0 %v3146
      %v3203 = vpop.f32.mrb[0].mxu0
      %v3204 = vadd.f32 0.0, %v3203
      %v3205 = vpop.f32.mrb[0].mxu0
      %v3206 = vpop.f32.mrb[0].mxu0
      %v3207 = vadd.f32 0.0, %v3206
      %v3208 = vpop.f32.mrb[0].mxu0
      %3209 = vmatprep.mubr.bf16.mxu0 0
      %3210 = vmatmul.mubr.bf16.gmra.mrb[0].mxu0 %v3149
      %v3211 = vpop.f32.mrb[0].mxu0
      %v3212 = vadd.f32 0.0, %v3211
      %v3213 = vpop.f32.mrb[0].mxu0
      %v3214 = vpop.f32.mrb[0].mxu0
      %v3215 = vadd.f32 0.0, %v3214
      %v3216 = vpop.f32.mrb[0].mxu0
      %3217 = vmatprep.mubr.bf16.mxu0 0
      %3218 = vmatmul.mubr.bf16.gmra.mrb[0].mxu0 %v3152
      %v3219 = vpop.f32.mrb[0].mxu0
      %v3220 = vadd.f32 0.0, %v3219
      %v3221 = vpop.f32.mrb[0].mxu0
      %v3222 = vpop.f32.mrb[0].mxu0
      %v3223 = vadd.f32 0.0, %v3222
      %v3224 = vpop.f32.mrb[0].mxu0
      %3225 = vmatprep.mubr.bf16.mxu0 0
      %3226 = vmatmul.mubr.bf16.gmra.mrb[0].mxu0 %v3155
      %v3227 = vpop.f32.mrb[0].mxu0
      %v3228 = vadd.f32 0.0, %v3227
      %v3229 = vpop.f32.mrb[0].mxu0
      %v3230 = vpop.f32.mrb[0].mxu0
      %v3231 = vadd.f32 0.0, %v3230
      %v3232 = vpop.f32.mrb[0].mxu0
      %3233 = vmatprep.mubr.bf16.mxu0 0
      %3234 = vmatmul.mubr.bf16.gmra.mrb[0].mxu0 %v3158
      %v3235 = vpop.f32.mrb[0].mxu0
      %v3236 = vadd.f32 0.0, %v3235
      %v3237 = vpop.f32.mrb[0].mxu0
      %v3238 = vpop.f32.mrb[0].mxu0
      %v3239 = vadd.f32 0.0, %v3238
      %v3240 = vpop.f32.mrb[0].mxu0
      %3241 = vmatprep.mubr.bf16.mxu0 0
      %3242 = vmatmul.mubr.bf16.gmra.mrb[0].mxu0 %v3161
      %v3243 = vpop.f32.mrb[0].mxu0
      %v3244 = vadd.f32 0.0, %v3243
      %v3245 = vpop.f32.mrb[0].mxu0
      %v3246 = vpop.f32.mrb[0].mxu0
      %v3247 = vadd.f32 0.0, %v3246
      %v3248 = vpop.f32.mrb[0].mxu0
      %3249 = vmatprep.mubr.bf16.mxu0 0
      %3250 = vmatmul.mubr.bf16.gmra.mrb[0].mxu0 %v3164
      %v3251 = vpop.f32.mrb[0].mxu0
      %v3252 = vadd.f32 0.0, %v3251
      %v3253 = vpop.f32.mrb[0].mxu0
      %v3254 = vpop.f32.mrb[0].mxu0
      %v3255 = vadd.f32 0.0, %v3254
      %v3256 = vpop.f32.mrb[0].mxu0
      %3257 = vmatprep.mubr.bf16.mxu0 0
      %3258 = vmatmul.mubr.bf16.gmra.mrb[0].mxu0 %v3167
      %v3259 = vpop.f32.mrb[0].mxu0
      %v3260 = vadd.f32 0.0, %v3259
      %v3261 = vpop.f32.mrb[0].mxu0
      %v3262 = vpop.f32.mrb[0].mxu0
      %v3263 = vadd.f32 0.0, %v3262
      %v3264 = vpop.f32.mrb[0].mxu0
      %3265 = vdwg.mxu0
      %vm3266 = vcmp.ge.f32.partialorder %v3204, 0.0
      %vm3267 = vcmp.ge.f32.partialorder %v3207, 0.0
      %vm3268 = vcmp.ge.f32.partialorder %v3212, 0.0
      %vm3269 = vcmp.ge.f32.partialorder %v3215, 0.0
      %vm3270 = vcmp.ge.f32.partialorder %v3220, 0.0
      %vm3271 = vcmp.ge.f32.partialorder %v3223, 0.0
      %vm3272 = vcmp.ge.f32.partialorder %v3228, 0.0
      %vm3273 = vcmp.ge.f32.partialorder %v3231, 0.0
      %vm3274 = vcmp.ge.f32.partialorder %v3236, 0.0
      %vm3275 = vcmp.ge.f32.partialorder %v3239, 0.0
      %vm3276 = vcmp.ge.f32.partialorder %v3244, 0.0
      %vm3277 = vcmp.ge.f32.partialorder %v3247, 0.0
      %vm3278 = vcmp.ge.f32.partialorder %v3252, 0.0
      %vm3279 = vcmp.ge.f32.partialorder %v3255, 0.0
      %vm3280 = vcmp.ge.f32.partialorder %v3260, 0.0
      %vm3281 = vcmp.ge.f32.partialorder %v3263, 0.0
      %v3282 = vmul.f32 %v3204, 0.2
      %v3283 = vmul.f32 %v3207, 0.2
      %v3284 = vmul.f32 %v3212, 0.2
      %v3285 = vmul.f32 %v3215, 0.2
      %v3286 = vmul.f32 %v3220, 0.2
      %v3287 = vmul.f32 %v3223, 0.2
      %v3288 = vmul.f32 %v3228, 0.2
      %v3289 = vmul.f32 %v3231, 0.2
      %v3290 = vmul.f32 %v3236, 0.2
      %v3291 = vmul.f32 %v3239, 0.2
      %v3292 = vmul.f32 %v3244, 0.2
      %v3293 = vmul.f32 %v3247, 0.2
      %v3294 = vmul.f32 %v3252, 0.2
      %v3295 = vmul.f32 %v3255, 0.2
      %v3296 = vmul.f32 %v3260, 0.2
      %v3297 = vmul.f32 %v3263, 0.2
      %v3298 = vsel %vm3266, %v3204, %v3282
      %v3299 = vsel %vm3267, %v3207, %v3283
      %v3300 = vsel %vm3268, %v3212, %v3284
      %v3301 = vsel %vm3269, %v3215, %v3285
      %v3302 = vsel %vm3270, %v3220, %v3286
      %v3303 = vsel %vm3271, %v3223, %v3287
      %v3304 = vsel %vm3272, %v3228, %v3288
      %v3305 = vsel %vm3273, %v3231, %v3289
      %v3306 = vsel %vm3274, %v3236, %v3290
      %v3307 = vsel %vm3275, %v3239, %v3291
      %v3308 = vsel %vm3276, %v3244, %v3292
      %v3309 = vsel %vm3277, %v3247, %v3293
      %v3310 = vsel %vm3278, %v3252, %v3294
      %v3311 = vsel %vm3279, %v3255, %v3295
      %v3312 = vsel %vm3280, %v3260, %v3296
      %v3313 = vsel %vm3281, %v3263, %v3297
      %vm3314 = vcmask 64512
      %3315 = vst.msk [vmem:[%s211] sm:$0xff] %vm3314, %v3298
      %3316 = vst.msk [vmem:[%s211 + $0x8] sm:$0xff] %vm3314, %v3299
      %3317 = vst.msk [vmem:[%s211 + $0x10] sm:$0xff] %vm3314, %v3300
      %3318 = vst.msk [vmem:[%s211 + $0x18] sm:$0xff] %vm3314, %v3301
      %3319 = vst.msk [vmem:[%s211 + $0x20] sm:$0xff] %vm3314, %v3302
      %3320 = vst.msk [vmem:[%s211 + $0x28] sm:$0xff] %vm3314, %v3303
      %3321 = vst.msk [vmem:[%s211 + $0x30] sm:$0xff] %vm3314, %v3304
      %3322 = vst.msk [vmem:[%s211 + $0x38] sm:$0xff] %vm3314, %v3305
      %3323 = vst.msk [vmem:[%s211 + $0x40] sm:$0xff] %vm3314, %v3306
      %3324 = vst.msk [vmem:[%s211 + $0x48] sm:$0xff] %vm3314, %v3307
      %3325 = vst.msk [vmem:[%s211 + $0x50] sm:$0xff] %vm3314, %v3308
      %3326 = vst.msk [vmem:[%s211 + $0x58] sm:$0xff] %vm3314, %v3309
      %3327 = vst.msk [vmem:[%s211 + $0x60] sm:$0xff] %vm3314, %v3310
      %3328 = vst.msk [vmem:[%s211 + $0x68] sm:$0xff] %vm3314, %v3311
      %3329 = vst.msk [vmem:[%s211 + $0x70] sm:$0xff] %vm3314, %v3312
      %3330 = vst.msk [vmem:[%s211 + $0x78] sm:$0xff] %vm3314, %v3313
      %s3331 = smul.u32 8, %s19
      %p3332 = scmp.lt.s32.totalorder %s18, 1
      %s3333 = scalar_select %p3332, %s18, 1
      %p3334 = scmp.lt.s32.totalorder %s3331, 7
      %s3335 = scalar_select %p3334, %s3331, 7
      %p3336 = scmp.lt.s32.totalorder %s20, 0
      %s3337 = scalar_select %p3336, %s20, 0
      %s3338 = smul.addr %s3335, 2
      %s3339 = sadd.s32 %s3337, %s3338
      %s3340 = smul.addr %s3333, 16
      %s3341 = sadd.s32 %s3339, %s3340
      %s3342 = smul.addr %s3341, 8
      %s3343 = scalar_lea.vmem %s2, %s3342
      // Predicated region
      $region29: #{tpu_custom_call.1} parent=27 // pred_check
        %p3344 = pneg %p108
      $region30: #{tpu_custom_call.1} parent=27 // pred_check_branch
        %3346 = sbr.rel (%p3344) target = $region32
      $region31: #{tpu_custom_call.1} parent=27 // pred_region
        %s3347 = smul.u32 8, %s19
      $region32: #{tpu_custom_call.1} parent=27 // pred_fallthru
        _
    $region28: #{tpu_custom_call.1} parent=5 // pred_fallthru
      _
    %p3348 = scmp.le.s32.totalorder 2, %s8
    // Predicated region
    $region33: #{tpu_custom_call.1} parent=5 // pred_check
      %p3349 = pneg %p3348
    $region34: #{tpu_custom_call.1} parent=5 // pred_check_branch
      %3351 = sbr.rel (%p3349) target = $region36
    $region35: #{tpu_custom_call.1} parent=5 // pred_region
      %s3352 = ssub.s32 %s8, 2
      // Predicated region
      $region37: #{tpu_custom_call.1} parent=35 // pred_check
        %p3353 = pneg %p114
      $region38: #{tpu_custom_call.1} parent=35 // pred_check_branch
        %3355 = sbr.rel (%p3353) target = $region40
      $region39: #{tpu_custom_call.1} parent=35 // pred_region
        %s3356 = smul.u32 8, %s22
        %p3357 = scmp.lt.s32.totalorder %s21, 1
        %s3358 = scalar_select %p3357, %s21, 1
        %p3359 = scmp.lt.s32.totalorder %s3356, 7
        %s3360 = scalar_select %p3359, %s3356, 7
        %p3361 = scmp.lt.s32.totalorder %s23, 0
        %s3362 = scalar_select %p3361, %s23, 0
        %s3363 = smul.addr %s3360, 2
        %s3364 = sadd.s32 %s3362, %s3363
        %s3365 = smul.addr %s3358, 16
        %s3366 = sadd.s32 %s3364, %s3365
        %s3367 = smul.addr %s3366, 8
        %s3368 = scalar_lea.vmem %s2, %s3367
      $region40: #{tpu_custom_call.1} parent=35 // pred_fallthru
        _
    $region36: #{tpu_custom_call.1} parent=5 // pred_fallthru
      _
  $region6: #{tpu_custom_call.1} parent=0 // loop_footer
    %s12 = sadd.s32 1, %s8
  $region7: #{tpu_custom_call.1} parent=0 // loop_footer_branch
    %7 = sbr.rel target = $region3
  $region8: #{tpu_custom_call.1} parent=0 // loop_exit
    _

</llo_original>
